<compile_context>
chip_gen: v7x
topology: tpu7x:2x2x1
jax: 0.10.0
libtpu: 0.0.40
codegen_flags: <defaults>
</compile_context>

<pallas_src>
import jax
import jax.numpy as jnp
from jax.experimental import pallas as pl
from jax.experimental.pallas import tpu as pltpu

LANE = 128


def _round_up(x, m):
    return ((x + m - 1) // m) * m


# --------------------------------------------------------------------------
# Kernel
# --------------------------------------------------------------------------
def t_agent_kernel(
    x_ref, h_ref, tac_ref,
    w1_ref, b1_ref,
    wih_ref, bih_ref, whh_ref, bhh_ref,
    whq_ref, bhq_ref, wft_ref, w2t_ref,
    q_ref, hh_ref,
):
    f32 = jnp.float32
    bf16 = jnp.bfloat16
    Hp = h_ref.shape[-1]            # padded hidden width (multiple of 128)
    Tp = wft_ref.shape[-1]          # padded tactic width (multiple of 128)

    x_in = x_ref[...]               # (tm, E)   bf16  (unpadded feature dim)
    h_bf = h_ref[...]               # (tm, Hp)  bf16  (zero in padded lanes)
    tac = tac_ref[...]              # (tm, T)   bf16  (unpadded feature dim)
    h = h_bf.astype(f32)

    # x = relu(fc1(inputs))  — output lanes padded to Hp, padded cols are 0.
    x = jnp.maximum(
        jnp.dot(x_in, w1_ref[...], preferred_element_type=f32) + b1_ref[...],
        0.0)
    x_bf = x.astype(bf16)

    # GRUCell, PyTorch gate order (r, z, n), two fused matmuls.
    # Gate blocks are each Hp wide, so the slices below are lane-block aligned.
    gi = jnp.dot(x_bf, wih_ref[...], preferred_element_type=f32) + bih_ref[...]
    gh = jnp.dot(h_bf, whh_ref[...], preferred_element_type=f32) + bhh_ref[...]

    r = jax.nn.sigmoid(gi[:, :Hp] + gh[:, :Hp])
    z = jax.nn.sigmoid(gi[:, Hp:2 * Hp] + gh[:, Hp:2 * Hp])
    n = jnp.tanh(gi[:, 2 * Hp:] + r * gh[:, 2 * Hp:])
    # hh = (1 - z) * n + z * h, rewritten to save a VPU multiply.
    hh = n + z * (h - n)                               # (tm, Hp) f32
    hh_bf = hh.astype(bf16)

    # Fused same-LHS matmul: hh @ [Wf_h | W2_h]; split is lane-block aligned.
    fused = jnp.dot(hh_bf, whq_ref[...], preferred_element_type=f32) + bhq_ref[...]

    # tactic' = relu(fc(cat(hh, tactic)))   (split-weight form)
    t2 = jnp.maximum(
        fused[:, :Tp]
        + jnp.dot(tac, wft_ref[...], preferred_element_type=f32),
        0.0)

    # q = fc2(cat(hh, tactic'))             (split-weight form)
    q = fused[:, Tp:] + jnp.dot(t2.astype(bf16), w2t_ref[...],
                                preferred_element_type=f32)

    q_ref[...] = q                  # f32, 128-lane dense
    hh_ref[...] = hh_bf             # bf16, 128-lane dense


# --------------------------------------------------------------------------
# Parameter preparation (pad / split / fuse / cast) — pure JAX, done once.
# --------------------------------------------------------------------------
def prepare_params(params, *, input_dim, rnn_hidden_dim, tactic_dim, n_actions):
    E, H, T, A = input_dim, rnn_hidden_dim, tactic_dim, n_actions
    Hp = _round_up(H, LANE)
    Tp = _round_up(T, LANE)
    Ap = _round_up(A, LANE)
    bf16, f32 = jnp.bfloat16, jnp.float32

    def pad_to(w, shape):
        out = jnp.zeros(shape, f32)
        return out.at[: w.shape[0], : w.shape[1]].set(w.astype(f32))

    w_ih, w_hh = params["w_ih"], params["w_hh"]        # (H, 3H), cols [r|z|n]
    b_ih, b_hh = params["b_ih"], params["b_hh"]        # (1, 3H)

    # Fused GRU input/hidden weights: three 128-lane gate blocks [r|z|n].
    def fuse_gate_w(w, rows):
        out = jnp.zeros((rows, 3 * Hp), f32)
        out = out.at[:H, 0 * Hp:0 * Hp + H].set(w[:, 0 * H:1 * H])
        out = out.at[:H, 1 * Hp:1 * Hp + H].set(w[:, 1 * H:2 * H])
        out = out.at[:H, 2 * Hp:2 * Hp + H].set(w[:, 2 * H:3 * H])
        return out

    def fuse_gate_b(b):
        out = jnp.zeros((1, 3 * Hp), f32)
        out = out.at[:, 0 * Hp:0 * Hp + H].set(b[:, 0 * H:1 * H])
        out = out.at[:, 1 * Hp:1 * Hp + H].set(b[:, 1 * H:2 * H])
        out = out.at[:, 2 * Hp:2 * Hp + H].set(b[:, 2 * H:3 * H])
        return out

    # Fused hh-output weight: cols [0:Tp) -> fc hh-part, [Tp:Tp+Ap) -> fc2 hh-part.
    whq = jnp.zeros((Hp, Tp + Ap), f32)
    whq = whq.at[:H, :T].set(params["wf_h"])
    whq = whq.at[:H, Tp:Tp + A].set(params["w2_h"])
    bhq = jnp.zeros((1, Tp + Ap), f32)
    bhq = bhq.at[:, :T].set(params["bf"])
    bhq = bhq.at[:, Tp:Tp + A].set(params["b2"])

    return dict(
        # fc1: K = E (unpadded), output lanes padded to Hp.
        w1=pad_to(params["w1"], (E, Hp)).astype(bf16),
        b1=pad_to(params["b1"], (1, Hp)),
        wih=fuse_gate_w(w_ih, Hp).astype(bf16),
        bih=fuse_gate_b(b_ih),
        whh=fuse_gate_w(w_hh, Hp).astype(bf16),
        bhh=fuse_gate_b(b_hh),
        whq=whq.astype(bf16),
        bhq=bhq,
        # fc tactic-part: K = T (unpadded), output lanes padded to Tp.
        wft=pad_to(params["wf_t"], (T, Tp)).astype(bf16),
        # fc2 tactic-part: K = Tp (t2 is padded), output lanes padded to Ap.
        w2t=pad_to(params["w2_t"], (Tp, Ap)).astype(bf16),
    )


_WEIGHT_ORDER = ("w1", "b1", "wih", "bih", "whh", "bhh",
                 "whq", "bhq", "wft", "w2t")


# --------------------------------------------------------------------------
# Wrapper
# --------------------------------------------------------------------------
def t_agent_forward(inputs, tactic, hidden_state, prepped, *,
                    rnn_hidden_dim, tactic_dim, n_actions, row_tile=1024):
    b, a, e = inputs.shape
    N = b * a
    H, T, A = rnn_hidden_dim, tactic_dim, n_actions
    Hp = _round_up(H, LANE)
    Tp = _round_up(T, LANE)
    Ap = _round_up(A, LANE)
    bf16 = jnp.bfloat16

    # Row tiling: tm multiple of 8, rows padded to a multiple of tm.
    tm = min(row_tile, _round_up(N, 8))
    # Give the "parallel" row axis at least two grid steps when possible so a
    # two-TensorCore chip (v7x) shards the work; harmless elsewhere.
    if _round_up(N, tm) // tm < 2 and N > 8:
        tm = max(8, _round_up((N + 1) // 2, 8))
    Np = _round_up(N, tm)

    def pad_rows(x2d, extra_cols=0):
        # Cast to bf16 first, then a single jnp.pad (no f32 zero/scatter pass).
        return jnp.pad(x2d.astype(bf16), ((0, Np - N), (0, extra_cols)))

    x = pad_rows(inputs.reshape(N, e))                 # (Np, E)   unpadded cols
    h = pad_rows(hidden_state.reshape(N, H), Hp - H)   # (Np, Hp)  lane-padded
    tac = pad_rows(tactic.reshape(N, T))               # (Np, T)   unpadded cols

    weights = [prepped[k] for k in _WEIGHT_ORDER]

    def row_spec(cols):
        return pl.BlockSpec((tm, cols), lambda i: (i, 0))

    def const_spec(w, single_buffer):
        # Constant index_map: weight block stays VMEM-resident across row tiles.
        if single_buffer and hasattr(pl, "Buffered"):
            return pl.BlockSpec(w.shape, lambda i: (0, 0),
                                pipeline_mode=pl.Buffered(1))
        return pl.BlockSpec(w.shape, lambda i: (0, 0))

    out_shape = (
        jax.ShapeDtypeStruct((Np, Ap), jnp.float32),   # q
        jax.ShapeDtypeStruct((Np, Hp), jnp.bfloat16),  # hh (bf16 writeback)
    )
    out_specs = [row_spec(Ap), row_spec(Hp)]

    def run(single_buffer_weights):
        in_specs = ([row_spec(e), row_spec(Hp), row_spec(T)]
                    + [const_spec(w, single_buffer_weights) for w in weights])
        return pl.pallas_call(
            t_agent_kernel,
            grid=(Np // tm,),
            in_specs=in_specs,
            out_specs=out_specs,
            out_shape=out_shape,
            compiler_params=pltpu.CompilerParams(
                dimension_semantics=("parallel",),
                vmem_limit_bytes=32 * 1024 * 1024,
            ),
        )(x, h, tac, *weights)

    try:
        q_pad, hh_pad = run(True)
    except Exception:
        # TODO(synk): pipeline_mode=pl.Buffered(1) not supported on this jax
        # version; fall back to default (double-buffered) weight specs.
        q_pad, hh_pad = run(False)

    q = q_pad[:N, :A].reshape(b, a, A)
    hh = hh_pad[:N, :H].astype(jnp.float32).reshape(b, a, H)
    return q, hh


# --------------------------------------------------------------------------
# Synthetic parameters (logical, f32, already transposed for x @ W)
# --------------------------------------------------------------------------
def init_params(key, input_dim, rnn_hidden_dim, tactic_dim, n_actions):
    H, T, A, E = rnn_hidden_dim, tactic_dim, n_actions, input_dim
    ks = jax.random.split(key, 12)
    s = 0.1
    return {
        # fc1: Linear(E, H)
        "w1": jax.random.normal(ks[0], (E, H), jnp.float32) * s,
        "b1": jax.random.normal(ks[1], (1, H), jnp.float32) * s,
        # GRUCell(H, H): (in, 3H) with gate order [r | z | n] along columns
        "w_ih": jax.random.normal(ks[2], (H, 3 * H), jnp.float32) * s,
        "b_ih": jax.random.normal(ks[3], (1, 3 * H), jnp.float32) * s,
        "w_hh": jax.random.normal(ks[4], (H, 3 * H), jnp.float32) * s,
        "b_hh": jax.random.normal(ks[5], (1, 3 * H), jnp.float32) * s,
        # fc: Linear(H + T, T), split into hh-part and tactic-part
        "wf_h": jax.random.normal(ks[6], (H, T), jnp.float32) * s,
        "wf_t": jax.random.normal(ks[7], (T, T), jnp.float32) * s,
        "bf": jax.random.normal(ks[8], (1, T), jnp.float32) * s,
        # fc2: Linear(H + T, A), split into hh-part and tactic-part
        "w2_h": jax.random.normal(ks[9], (H, A), jnp.float32) * s,
        "w2_t": jax.random.normal(ks[10], (T, A), jnp.float32) * s,
        "b2": jax.random.normal(ks[11], (1, A), jnp.float32) * s,
    }


def t_agent_reference(inputs, tactic, hidden_state, params, *,
                      rnn_hidden_dim, tactic_dim, n_actions):
    """Pure-JAX f32 reference mirroring the PyTorch forward."""
    b, a, e = inputs.shape
    H, T = rnn_hidden_dim, tactic_dim
    x = inputs.reshape(-1, e)
    h = hidden_state.reshape(-1, H)
    tac = tactic.reshape(-1, T)

    x = jax.nn.relu(x @ params["w1"] + params["b1"])
    gi = x @ params["w_ih"] + params["b_ih"]
    gh = h @ params["w_hh"] + params["b_hh"]
    r = jax.nn.sigmoid(gi[:, :H] + gh[:, :H])
    z = jax.nn.sigmoid(gi[:, H:2 * H] + gh[:, H:2 * H])
    n = jnp.tanh(gi[:, 2 * H:] + r * gh[:, 2 * H:])
    hh = (1.0 - z) * n + z * h

    t2 = jax.nn.relu(hh @ params["wf_h"] + tac @ params["wf_t"] + params["bf"])
    q = hh @ params["w2_h"] + t2 @ params["w2_t"] + params["b2"]
    return q.reshape(b, a, -1), hh.reshape(b, a, -1)


if __name__ == "__main__":
    # Small shapes consistent with the module's forward.
    b, a, e = 2, 4, 16          # batch, agents, obs/input_shape
    H, T, A = 32, 8, 6          # rnn_hidden_dim, tactic_dim, n_actions

    key = jax.random.PRNGKey(0)
    k_in, k_tac, k_h, k_p = jax.random.split(key, 4)

    inputs = jax.random.normal(k_in, (b, a, e), jnp.float32)
    tactic = jax.random.normal(k_tac, (b, a, T), jnp.float32)
    hidden = jax.random.normal(k_h, (b, a, H), jnp.float32)

    params = init_params(k_p, e, H, T, A)
    prepped = prepare_params(params, input_dim=e, rnn_hidden_dim=H,
                             tactic_dim=T, n_actions=A)

    q, hh = t_agent_forward(inputs, tactic, hidden, prepped,
                            rnn_hidden_dim=H, tactic_dim=T, n_actions=A)
    q = jax.block_until_ready(q)
    hh = jax.block_until_ready(hh)

    q_ref, hh_ref = t_agent_reference(inputs, tactic, hidden, params,
                                      rnn_hidden_dim=H, tactic_dim=T,
                                      n_actions=A)

    assert q.shape == (b, a, A) and hh.shape == (b, a, H)
    # bf16 MXU operands with f32 accumulation (and bf16 hh writeback): compare
    # against the f32 reference with a correspondingly loosened tolerance.
    assert jnp.allclose(q, q_ref, atol=5e-2, rtol=5e-2), \
        f"q max err {jnp.max(jnp.abs(q - q_ref))}"
    assert jnp.allclose(hh, hh_ref, atol=5e-2, rtol=5e-2), \
        f"hh max err {jnp.max(jnp.abs(hh - hh_ref))}"

    print("KERNEL_OK")
</pallas_src>

<mosaic_0001>
module attributes {stable_mosaic.version = 11 : i64} {
  func.func @t_agent_kernel(%arg0: i32, %arg1: memref<8x16xbf16, #tpu.memory_space<vmem>>, %arg2: memref<8x128xbf16, #tpu.memory_space<vmem>>, %arg3: memref<8x8xbf16, #tpu.memory_space<vmem>>, %arg4: memref<16x128xbf16, #tpu.memory_space<vmem>>, %arg5: memref<1x128xf32, #tpu.memory_space<vmem>>, %arg6: memref<128x384xbf16, #tpu.memory_space<vmem>>, %arg7: memref<1x384xf32, #tpu.memory_space<vmem>>, %arg8: memref<128x384xbf16, #tpu.memory_space<vmem>>, %arg9: memref<1x384xf32, #tpu.memory_space<vmem>>, %arg10: memref<128x256xbf16, #tpu.memory_space<vmem>>, %arg11: memref<1x256xf32, #tpu.memory_space<vmem>>, %arg12: memref<8x128xbf16, #tpu.memory_space<vmem>>, %arg13: memref<128x128xbf16, #tpu.memory_space<vmem>>, %arg14: memref<8x128xf32, #tpu.memory_space<vmem>>, %arg15: memref<8x128xbf16, #tpu.memory_space<vmem>>) attributes {dimension_semantics = [#tpu.dimension_semantics<parallel>], iteration_bounds = array<i64: 1>, scalar_prefetch = 0 : i64, scratch_operands = 0 : i64, tpu.core_type = #tpu.core_type<tc>, window_params = [{transform_indices = @transform_0, window_bounds = array<i64: 8, 16>}, {transform_indices = @transform_1, window_bounds = array<i64: 8, 128>}, {transform_indices = @transform_2, window_bounds = array<i64: 8, 8>}, {pipeline_mode = #tpu.pipeline_mode<synchronous>, transform_indices = @transform_3, window_bounds = array<i64: 16, 128>}, {pipeline_mode = #tpu.pipeline_mode<synchronous>, transform_indices = @transform_4, window_bounds = array<i64: 1, 128>}, {pipeline_mode = #tpu.pipeline_mode<synchronous>, transform_indices = @transform_5, window_bounds = array<i64: 128, 384>}, {pipeline_mode = #tpu.pipeline_mode<synchronous>, transform_indices = @transform_6, window_bounds = array<i64: 1, 384>}, {pipeline_mode = #tpu.pipeline_mode<synchronous>, transform_indices = @transform_7, window_bounds = array<i64: 128, 384>}, {pipeline_mode = #tpu.pipeline_mode<synchronous>, transform_indices = @transform_8, window_bounds = array<i64: 1, 384>}, {pipeline_mode = #tpu.pipeline_mode<synchronous>, transform_indices = @transform_9, window_bounds = array<i64: 128, 256>}, {pipeline_mode = #tpu.pipeline_mode<synchronous>, transform_indices = @transform_10, window_bounds = array<i64: 1, 256>}, {pipeline_mode = #tpu.pipeline_mode<synchronous>, transform_indices = @transform_11, window_bounds = array<i64: 8, 128>}, {pipeline_mode = #tpu.pipeline_mode<synchronous>, transform_indices = @transform_12, window_bounds = array<i64: 128, 128>}, {transform_indices = @transform_13, window_bounds = array<i64: 8, 128>}, {transform_indices = @transform_14, window_bounds = array<i64: 8, 128>}]} {
    %c0 = arith.constant 0 : index
    %c0_0 = arith.constant 0 : index
    %0 = vector.load %arg1[%c0, %c0_0] : memref<8x16xbf16, #tpu.memory_space<vmem>>, vector<8x16xbf16>
    %c0_1 = arith.constant 0 : index
    %c0_2 = arith.constant 0 : index
    %1 = vector.load %arg2[%c0_1, %c0_2] : memref<8x128xbf16, #tpu.memory_space<vmem>>, vector<8x128xbf16>
    %c0_3 = arith.constant 0 : index
    %c0_4 = arith.constant 0 : index
    %2 = vector.load %arg3[%c0_3, %c0_4] : memref<8x8xbf16, #tpu.memory_space<vmem>>, vector<8x8xbf16>
    %3 = arith.extf %1 : vector<8x128xbf16> to vector<8x128xf32>
    %c0_5 = arith.constant 0 : index
    %c0_6 = arith.constant 0 : index
    %4 = vector.load %arg4[%c0_5, %c0_6] : memref<16x128xbf16, #tpu.memory_space<vmem>>, vector<16x128xbf16>
    %cst = arith.constant dense<0.000000e+00> : vector<8x128xf32>
    %5 = tpu.matmul %0, %4, %cst {dimension_numbers = #tpu.dot_dimension_numbers<[1], [0], [0], [1], [0, 0, 1, 1], [], []>} : vector<8x16xbf16>, vector<16x128xbf16>, vector<8x128xf32> -> vector<8x128xf32>
    %c0_7 = arith.constant 0 : index
    %c0_8 = arith.constant 0 : index
    %6 = vector.load %arg5[%c0_7, %c0_8] : memref<1x128xf32, #tpu.memory_space<vmem>>, vector<1x128xf32>
    %7 = vector.broadcast %6 : vector<1x128xf32> to vector<8x128xf32>
    %8 = arith.addf %5, %7 : vector<8x128xf32>
    %cst_9 = arith.constant 0.000000e+00 : f32
    %9 = vector.broadcast %cst_9 : f32 to vector<8x128xf32>
    %10 = arith.maximumf %8, %9 : vector<8x128xf32>
    %11 = arith.truncf %10 : vector<8x128xf32> to vector<8x128xbf16>
    %c0_10 = arith.constant 0 : index
    %c0_11 = arith.constant 0 : index
    %12 = vector.load %arg6[%c0_10, %c0_11] : memref<128x384xbf16, #tpu.memory_space<vmem>>, vector<128x384xbf16>
    %cst_12 = arith.constant dense<0.000000e+00> : vector<8x384xf32>
    %13 = tpu.matmul %11, %12, %cst_12 {dimension_numbers = #tpu.dot_dimension_numbers<[1], [0], [0], [1], [0, 0, 1, 1], [], []>} : vector<8x128xbf16>, vector<128x384xbf16>, vector<8x384xf32> -> vector<8x384xf32>
    %c0_13 = arith.constant 0 : index
    %c0_14 = arith.constant 0 : index
    %14 = vector.load %arg7[%c0_13, %c0_14] : memref<1x384xf32, #tpu.memory_space<vmem>>, vector<1x384xf32>
    %15 = vector.broadcast %14 : vector<1x384xf32> to vector<8x384xf32>
    %16 = arith.addf %13, %15 : vector<8x384xf32>
    %c0_15 = arith.constant 0 : index
    %c0_16 = arith.constant 0 : index
    %17 = vector.load %arg8[%c0_15, %c0_16] : memref<128x384xbf16, #tpu.memory_space<vmem>>, vector<128x384xbf16>
    %cst_17 = arith.constant dense<0.000000e+00> : vector<8x384xf32>
    %18 = tpu.matmul %1, %17, %cst_17 {dimension_numbers = #tpu.dot_dimension_numbers<[1], [0], [0], [1], [0, 0, 1, 1], [], []>} : vector<8x128xbf16>, vector<128x384xbf16>, vector<8x384xf32> -> vector<8x384xf32>
    %c0_18 = arith.constant 0 : index
    %c0_19 = arith.constant 0 : index
    %19 = vector.load %arg9[%c0_18, %c0_19] : memref<1x384xf32, #tpu.memory_space<vmem>>, vector<1x384xf32>
    %20 = vector.broadcast %19 : vector<1x384xf32> to vector<8x384xf32>
    %21 = arith.addf %18, %20 : vector<8x384xf32>
    %22 = vector.extract_strided_slice %16 {offsets = [0, 0], sizes = [8, 128], strides = [1, 1]} : vector<8x384xf32> to vector<8x128xf32>
    %23 = vector.extract_strided_slice %21 {offsets = [0, 0], sizes = [8, 128], strides = [1, 1]} : vector<8x384xf32> to vector<8x128xf32>
    %24 = arith.addf %22, %23 : vector<8x128xf32>
    %25 = arith.negf %24 : vector<8x128xf32>
    %26 = math.exp %25 : vector<8x128xf32>
    %cst_20 = arith.constant 1.000000e+00 : f32
    %27 = vector.broadcast %cst_20 : f32 to vector<8x128xf32>
    %28 = arith.addf %27, %26 : vector<8x128xf32>
    %29 = arith.divf %27, %28 : vector<8x128xf32>
    %30 = vector.extract_strided_slice %16 {offsets = [0, 128], sizes = [8, 128], strides = [1, 1]} : vector<8x384xf32> to vector<8x128xf32>
    %31 = vector.extract_strided_slice %21 {offsets = [0, 128], sizes = [8, 128], strides = [1, 1]} : vector<8x384xf32> to vector<8x128xf32>
    %32 = arith.addf %30, %31 : vector<8x128xf32>
    %33 = arith.negf %32 : vector<8x128xf32>
    %34 = math.exp %33 : vector<8x128xf32>
    %cst_21 = arith.constant 1.000000e+00 : f32
    %35 = vector.broadcast %cst_21 : f32 to vector<8x128xf32>
    %36 = arith.addf %35, %34 : vector<8x128xf32>
    %37 = arith.divf %35, %36 : vector<8x128xf32>
    %38 = vector.extract_strided_slice %16 {offsets = [0, 256], sizes = [8, 128], strides = [1, 1]} : vector<8x384xf32> to vector<8x128xf32>
    %39 = vector.extract_strided_slice %21 {offsets = [0, 256], sizes = [8, 128], strides = [1, 1]} : vector<8x384xf32> to vector<8x128xf32>
    %40 = arith.mulf %29, %39 : vector<8x128xf32>
    %41 = arith.addf %38, %40 : vector<8x128xf32>
    %42 = math.tanh %41 : vector<8x128xf32>
    %43 = arith.subf %3, %42 : vector<8x128xf32>
    %44 = arith.mulf %37, %43 : vector<8x128xf32>
    %45 = arith.addf %42, %44 : vector<8x128xf32>
    %46 = arith.truncf %45 : vector<8x128xf32> to vector<8x128xbf16>
    %c0_22 = arith.constant 0 : index
    %c0_23 = arith.constant 0 : index
    %47 = vector.load %arg10[%c0_22, %c0_23] : memref<128x256xbf16, #tpu.memory_space<vmem>>, vector<128x256xbf16>
    %cst_24 = arith.constant dense<0.000000e+00> : vector<8x256xf32>
    %48 = tpu.matmul %46, %47, %cst_24 {dimension_numbers = #tpu.dot_dimension_numbers<[1], [0], [0], [1], [0, 0, 1, 1], [], []>} : vector<8x128xbf16>, vector<128x256xbf16>, vector<8x256xf32> -> vector<8x256xf32>
    %c0_25 = arith.constant 0 : index
    %c0_26 = arith.constant 0 : index
    %49 = vector.load %arg11[%c0_25, %c0_26] : memref<1x256xf32, #tpu.memory_space<vmem>>, vector<1x256xf32>
    %50 = vector.broadcast %49 : vector<1x256xf32> to vector<8x256xf32>
    %51 = arith.addf %48, %50 : vector<8x256xf32>
    %52 = vector.extract_strided_slice %51 {offsets = [0, 0], sizes = [8, 128], strides = [1, 1]} : vector<8x256xf32> to vector<8x128xf32>
    %c0_27 = arith.constant 0 : index
    %c0_28 = arith.constant 0 : index
    %53 = vector.load %arg12[%c0_27, %c0_28] : memref<8x128xbf16, #tpu.memory_space<vmem>>, vector<8x128xbf16>
    %cst_29 = arith.constant dense<0.000000e+00> : vector<8x128xf32>
    %54 = tpu.matmul %2, %53, %cst_29 {dimension_numbers = #tpu.dot_dimension_numbers<[1], [0], [0], [1], [0, 0, 1, 1], [], []>} : vector<8x8xbf16>, vector<8x128xbf16>, vector<8x128xf32> -> vector<8x128xf32>
    %55 = arith.addf %52, %54 : vector<8x128xf32>
    %cst_30 = arith.constant 0.000000e+00 : f32
    %56 = vector.broadcast %cst_30 : f32 to vector<8x128xf32>
    %57 = arith.maximumf %55, %56 : vector<8x128xf32>
    %58 = vector.extract_strided_slice %51 {offsets = [0, 128], sizes = [8, 128], strides = [1, 1]} : vector<8x256xf32> to vector<8x128xf32>
    %59 = arith.truncf %57 : vector<8x128xf32> to vector<8x128xbf16>
    %c0_31 = arith.constant 0 : index
    %c0_32 = arith.constant 0 : index
    %60 = vector.load %arg13[%c0_31, %c0_32] : memref<128x128xbf16, #tpu.memory_space<vmem>>, vector<128x128xbf16>
    %cst_33 = arith.constant dense<0.000000e+00> : vector<8x128xf32>
    %61 = tpu.matmul %59, %60, %cst_33 {dimension_numbers = #tpu.dot_dimension_numbers<[1], [0], [0], [1], [0, 0, 1, 1], [], []>} : vector<8x128xbf16>, vector<128x128xbf16>, vector<8x128xf32> -> vector<8x128xf32>
    %62 = arith.addf %58, %61 : vector<8x128xf32>
    %c0_34 = arith.constant 0 : index
    %c0_35 = arith.constant 0 : index
    %63 = vector.load %arg14[%c0_34, %c0_35] : memref<8x128xf32, #tpu.memory_space<vmem>>, vector<8x128xf32>
    tpu.vector_store %arg14[%c0_34, %c0_35], %62 {strides = array<i32>} : memref<8x128xf32, #tpu.memory_space<vmem>>, vector<8x128xf32>,
    %c0_36 = arith.constant 0 : index
    %c0_37 = arith.constant 0 : index
    %64 = vector.load %arg15[%c0_36, %c0_37] : memref<8x128xbf16, #tpu.memory_space<vmem>>, vector<8x128xbf16>
    tpu.vector_store %arg15[%c0_36, %c0_37], %46 {strides = array<i32>} : memref<8x128xbf16, #tpu.memory_space<vmem>>, vector<8x128xbf16>,
    return
  }
  func.func @transform_0(%arg0: i32) -> (i32, i32) {
    %c0_i32 = arith.constant 0 : i32
    %c0_i32_0 = arith.constant 0 : i32
    return %arg0, %c0_i32 : i32, i32
  }
  func.func @transform_1(%arg0: i32) -> (i32, i32) {
    %c0_i32 = arith.constant 0 : i32
    %c0_i32_0 = arith.constant 0 : i32
    return %arg0, %c0_i32 : i32, i32
  }
  func.func @transform_2(%arg0: i32) -> (i32, i32) {
    %c0_i32 = arith.constant 0 : i32
    %c0_i32_0 = arith.constant 0 : i32
    return %arg0, %c0_i32 : i32, i32
  }
  func.func @transform_3(%arg0: i32) -> (i32, i32) {
    %c0_i32 = arith.constant 0 : i32
    %c0_i32_0 = arith.constant 0 : i32
    %c0_i32_1 = arith.constant 0 : i32
    return %c0_i32, %c0_i32_0 : i32, i32
  }
  func.func @transform_4(%arg0: i32) -> (i32, i32) {
    %c0_i32 = arith.constant 0 : i32
    %c0_i32_0 = arith.constant 0 : i32
    %c0_i32_1 = arith.constant 0 : i32
    return %c0_i32, %c0_i32_0 : i32, i32
  }
  func.func @transform_5(%arg0: i32) -> (i32, i32) {
    %c0_i32 = arith.constant 0 : i32
    %c0_i32_0 = arith.constant 0 : i32
    %c0_i32_1 = arith.constant 0 : i32
    return %c0_i32, %c0_i32_0 : i32, i32
  }
  func.func @transform_6(%arg0: i32) -> (i32, i32) {
    %c0_i32 = arith.constant 0 : i32
    %c0_i32_0 = arith.constant 0 : i32
    %c0_i32_1 = arith.constant 0 : i32
    return %c0_i32, %c0_i32_0 : i32, i32
  }
  func.func @transform_7(%arg0: i32) -> (i32, i32) {
    %c0_i32 = arith.constant 0 : i32
    %c0_i32_0 = arith.constant 0 : i32
    %c0_i32_1 = arith.constant 0 : i32
    return %c0_i32, %c0_i32_0 : i32, i32
  }
  func.func @transform_8(%arg0: i32) -> (i32, i32) {
    %c0_i32 = arith.constant 0 : i32
    %c0_i32_0 = arith.constant 0 : i32
    %c0_i32_1 = arith.constant 0 : i32
    return %c0_i32, %c0_i32_0 : i32, i32
  }
  func.func @transform_9(%arg0: i32) -> (i32, i32) {
    %c0_i32 = arith.constant 0 : i32
    %c0_i32_0 = arith.constant 0 : i32
    %c0_i32_1 = arith.constant 0 : i32
    return %c0_i32, %c0_i32_0 : i32, i32
  }
  func.func @transform_10(%arg0: i32) -> (i32, i32) {
    %c0_i32 = arith.constant 0 : i32
    %c0_i32_0 = arith.constant 0 : i32
    %c0_i32_1 = arith.constant 0 : i32
    return %c0_i32, %c0_i32_0 : i32, i32
  }
  func.func @transform_11(%arg0: i32) -> (i32, i32) {
    %c0_i32 = arith.constant 0 : i32
    %c0_i32_0 = arith.constant 0 : i32
    %c0_i32_1 = arith.constant 0 : i32
    return %c0_i32, %c0_i32_0 : i32, i32
  }
  func.func @transform_12(%arg0: i32) -> (i32, i32) {
    %c0_i32 = arith.constant 0 : i32
    %c0_i32_0 = arith.constant 0 : i32
    %c0_i32_1 = arith.constant 0 : i32
    return %c0_i32, %c0_i32_0 : i32, i32
  }
  func.func @transform_13(%arg0: i32) -> (i32, i32) {
    %c0_i32 = arith.constant 0 : i32
    %c0_i32_0 = arith.constant 0 : i32
    return %arg0, %c0_i32 : i32, i32
  }
  func.func @transform_14(%arg0: i32) -> (i32, i32) {
    %c0_i32 = arith.constant 0 : i32
    %c0_i32_0 = arith.constant 0 : i32
    return %arg0, %c0_i32 : i32, i32
  }
}

module attributes {stable_mosaic.version = 11 : i64} {
  func.func @t_agent_kernel(%arg0: i32, %arg1: memref<8x16xbf16, #tpu.memory_space<vmem>>, %arg2: memref<8x128xbf16, #tpu.memory_space<vmem>>, %arg3: memref<8x8xbf16, #tpu.memory_space<vmem>>, %arg4: memref<16x128xbf16, #tpu.memory_space<vmem>>, %arg5: memref<1x128xf32, #tpu.memory_space<vmem>>, %arg6: memref<128x384xbf16, #tpu.memory_space<vmem>>, %arg7: memref<1x384xf32, #tpu.memory_space<vmem>>, %arg8: memref<128x384xbf16, #tpu.memory_space<vmem>>, %arg9: memref<1x384xf32, #tpu.memory_space<vmem>>, %arg10: memref<128x256xbf16, #tpu.memory_space<vmem>>, %arg11: memref<1x256xf32, #tpu.memory_space<vmem>>, %arg12: memref<8x128xbf16, #tpu.memory_space<vmem>>, %arg13: memref<128x128xbf16, #tpu.memory_space<vmem>>, %arg14: memref<8x128xf32, #tpu.memory_space<vmem>>, %arg15: memref<8x128xbf16, #tpu.memory_space<vmem>>) attributes {dimension_semantics = [#tpu.dimension_semantics<parallel>], iteration_bounds = array<i64: 1>, scalar_prefetch = 0 : i64, scratch_operands = 0 : i64, tpu.core_type = #tpu.core_type<tc>, window_params = [{transform_indices = @transform_0, window_bounds = array<i64: 8, 16>}, {transform_indices = @transform_1, window_bounds = array<i64: 8, 128>}, {transform_indices = @transform_2, window_bounds = array<i64: 8, 8>}, {pipeline_mode = #tpu.pipeline_mode<synchronous>, transform_indices = @transform_3, window_bounds = array<i64: 16, 128>}, {pipeline_mode = #tpu.pipeline_mode<synchronous>, transform_indices = @transform_4, window_bounds = array<i64: 1, 128>}, {pipeline_mode = #tpu.pipeline_mode<synchronous>, transform_indices = @transform_5, window_bounds = array<i64: 128, 384>}, {pipeline_mode = #tpu.pipeline_mode<synchronous>, transform_indices = @transform_6, window_bounds = array<i64: 1, 384>}, {pipeline_mode = #tpu.pipeline_mode<synchronous>, transform_indices = @transform_7, window_bounds = array<i64: 128, 384>}, {pipeline_mode = #tpu.pipeline_mode<synchronous>, transform_indices = @transform_8, window_bounds = array<i64: 1, 384>}, {pipeline_mode = #tpu.pipeline_mode<synchronous>, transform_indices = @transform_9, window_bounds = array<i64: 128, 256>}, {pipeline_mode = #tpu.pipeline_mode<synchronous>, transform_indices = @transform_10, window_bounds = array<i64: 1, 256>}, {pipeline_mode = #tpu.pipeline_mode<synchronous>, transform_indices = @transform_11, window_bounds = array<i64: 8, 128>}, {pipeline_mode = #tpu.pipeline_mode<synchronous>, transform_indices = @transform_12, window_bounds = array<i64: 128, 128>}, {transform_indices = @transform_13, window_bounds = array<i64: 8, 128>}, {transform_indices = @transform_14, window_bounds = array<i64: 8, 128>}]} {
    %c0 = arith.constant 0 : index
    %c0_0 = arith.constant 0 : index
    %0 = vector.load %arg1[%c0, %c0_0] : memref<8x16xbf16, #tpu.memory_space<vmem>>, vector<8x16xbf16>
    %c0_1 = arith.constant 0 : index
    %c0_2 = arith.constant 0 : index
    %1 = vector.load %arg2[%c0_1, %c0_2] : memref<8x128xbf16, #tpu.memory_space<vmem>>, vector<8x128xbf16>
    %c0_3 = arith.constant 0 : index
    %c0_4 = arith.constant 0 : index
    %2 = vector.load %arg3[%c0_3, %c0_4] : memref<8x8xbf16, #tpu.memory_space<vmem>>, vector<8x8xbf16>
    %3 = arith.extf %1 : vector<8x128xbf16> to vector<8x128xf32>
    %c0_5 = arith.constant 0 : index
    %c0_6 = arith.constant 0 : index
    %4 = vector.load %arg4[%c0_5, %c0_6] : memref<16x128xbf16, #tpu.memory_space<vmem>>, vector<16x128xbf16>
    %cst = arith.constant dense<0.000000e+00> : vector<8x128xf32>
    %5 = tpu.matmul %0, %4, %cst {dimension_numbers = #tpu.dot_dimension_numbers<[1], [0], [0], [1], [0, 0, 1, 1], [], []>} : vector<8x16xbf16>, vector<16x128xbf16>, vector<8x128xf32> -> vector<8x128xf32>
    %c0_7 = arith.constant 0 : index
    %c0_8 = arith.constant 0 : index
    %6 = vector.load %arg5[%c0_7, %c0_8] : memref<1x128xf32, #tpu.memory_space<vmem>>, vector<1x128xf32>
    %7 = vector.broadcast %6 : vector<1x128xf32> to vector<8x128xf32>
    %8 = arith.addf %5, %7 : vector<8x128xf32>
    %cst_9 = arith.constant 0.000000e+00 : f32
    %9 = vector.broadcast %cst_9 : f32 to vector<8x128xf32>
    %10 = arith.maximumf %8, %9 : vector<8x128xf32>
    %11 = arith.truncf %10 : vector<8x128xf32> to vector<8x128xbf16>
    %c0_10 = arith.constant 0 : index
    %c0_11 = arith.constant 0 : index
    %12 = vector.load %arg6[%c0_10, %c0_11] : memref<128x384xbf16, #tpu.memory_space<vmem>>, vector<128x384xbf16>
    %cst_12 = arith.constant dense<0.000000e+00> : vector<8x384xf32>
    %13 = tpu.matmul %11, %12, %cst_12 {dimension_numbers = #tpu.dot_dimension_numbers<[1], [0], [0], [1], [0, 0, 1, 1], [], []>} : vector<8x128xbf16>, vector<128x384xbf16>, vector<8x384xf32> -> vector<8x384xf32>
    %c0_13 = arith.constant 0 : index
    %c0_14 = arith.constant 0 : index
    %14 = vector.load %arg7[%c0_13, %c0_14] : memref<1x384xf32, #tpu.memory_space<vmem>>, vector<1x384xf32>
    %15 = vector.broadcast %14 : vector<1x384xf32> to vector<8x384xf32>
    %16 = arith.addf %13, %15 : vector<8x384xf32>
    %c0_15 = arith.constant 0 : index
    %c0_16 = arith.constant 0 : index
    %17 = vector.load %arg8[%c0_15, %c0_16] : memref<128x384xbf16, #tpu.memory_space<vmem>>, vector<128x384xbf16>
    %cst_17 = arith.constant dense<0.000000e+00> : vector<8x384xf32>
    %18 = tpu.matmul %1, %17, %cst_17 {dimension_numbers = #tpu.dot_dimension_numbers<[1], [0], [0], [1], [0, 0, 1, 1], [], []>} : vector<8x128xbf16>, vector<128x384xbf16>, vector<8x384xf32> -> vector<8x384xf32>
    %c0_18 = arith.constant 0 : index
    %c0_19 = arith.constant 0 : index
    %19 = vector.load %arg9[%c0_18, %c0_19] : memref<1x384xf32, #tpu.memory_space<vmem>>, vector<1x384xf32>
    %20 = vector.broadcast %19 : vector<1x384xf32> to vector<8x384xf32>
    %21 = arith.addf %18, %20 : vector<8x384xf32>
    %22 = vector.extract_strided_slice %16 {offsets = [0, 0], sizes = [8, 128], strides = [1, 1]} : vector<8x384xf32> to vector<8x128xf32>
    %23 = vector.extract_strided_slice %21 {offsets = [0, 0], sizes = [8, 128], strides = [1, 1]} : vector<8x384xf32> to vector<8x128xf32>
    %24 = arith.addf %22, %23 : vector<8x128xf32>
    %25 = arith.negf %24 : vector<8x128xf32>
    %26 = math.exp %25 : vector<8x128xf32>
    %cst_20 = arith.constant 1.000000e+00 : f32
    %27 = vector.broadcast %cst_20 : f32 to vector<8x128xf32>
    %28 = arith.addf %27, %26 : vector<8x128xf32>
    %29 = arith.divf %27, %28 : vector<8x128xf32>
    %30 = vector.extract_strided_slice %16 {offsets = [0, 128], sizes = [8, 128], strides = [1, 1]} : vector<8x384xf32> to vector<8x128xf32>
    %31 = vector.extract_strided_slice %21 {offsets = [0, 128], sizes = [8, 128], strides = [1, 1]} : vector<8x384xf32> to vector<8x128xf32>
    %32 = arith.addf %30, %31 : vector<8x128xf32>
    %33 = arith.negf %32 : vector<8x128xf32>
    %34 = math.exp %33 : vector<8x128xf32>
    %cst_21 = arith.constant 1.000000e+00 : f32
    %35 = vector.broadcast %cst_21 : f32 to vector<8x128xf32>
    %36 = arith.addf %35, %34 : vector<8x128xf32>
    %37 = arith.divf %35, %36 : vector<8x128xf32>
    %38 = vector.extract_strided_slice %16 {offsets = [0, 256], sizes = [8, 128], strides = [1, 1]} : vector<8x384xf32> to vector<8x128xf32>
    %39 = vector.extract_strided_slice %21 {offsets = [0, 256], sizes = [8, 128], strides = [1, 1]} : vector<8x384xf32> to vector<8x128xf32>
    %40 = arith.mulf %29, %39 : vector<8x128xf32>
    %41 = arith.addf %38, %40 : vector<8x128xf32>
    %42 = math.tanh %41 : vector<8x128xf32>
    %43 = arith.subf %3, %42 : vector<8x128xf32>
    %44 = arith.mulf %37, %43 : vector<8x128xf32>
    %45 = arith.addf %42, %44 : vector<8x128xf32>
    %46 = arith.truncf %45 : vector<8x128xf32> to vector<8x128xbf16>
    %c0_22 = arith.constant 0 : index
    %c0_23 = arith.constant 0 : index
    %47 = vector.load %arg10[%c0_22, %c0_23] : memref<128x256xbf16, #tpu.memory_space<vmem>>, vector<128x256xbf16>
    %cst_24 = arith.constant dense<0.000000e+00> : vector<8x256xf32>
    %48 = tpu.matmul %46, %47, %cst_24 {dimension_numbers = #tpu.dot_dimension_numbers<[1], [0], [0], [1], [0, 0, 1, 1], [], []>} : vector<8x128xbf16>, vector<128x256xbf16>, vector<8x256xf32> -> vector<8x256xf32>
    %c0_25 = arith.constant 0 : index
    %c0_26 = arith.constant 0 : index
    %49 = vector.load %arg11[%c0_25, %c0_26] : memref<1x256xf32, #tpu.memory_space<vmem>>, vector<1x256xf32>
    %50 = vector.broadcast %49 : vector<1x256xf32> to vector<8x256xf32>
    %51 = arith.addf %48, %50 : vector<8x256xf32>
    %52 = vector.extract_strided_slice %51 {offsets = [0, 0], sizes = [8, 128], strides = [1, 1]} : vector<8x256xf32> to vector<8x128xf32>
    %c0_27 = arith.constant 0 : index
    %c0_28 = arith.constant 0 : index
    %53 = vector.load %arg12[%c0_27, %c0_28] : memref<8x128xbf16, #tpu.memory_space<vmem>>, vector<8x128xbf16>
    %cst_29 = arith.constant dense<0.000000e+00> : vector<8x128xf32>
    %54 = tpu.matmul %2, %53, %cst_29 {dimension_numbers = #tpu.dot_dimension_numbers<[1], [0], [0], [1], [0, 0, 1, 1], [], []>} : vector<8x8xbf16>, vector<8x128xbf16>, vector<8x128xf32> -> vector<8x128xf32>
    %55 = arith.addf %52, %54 : vector<8x128xf32>
    %cst_30 = arith.constant 0.000000e+00 : f32
    %56 = vector.broadcast %cst_30 : f32 to vector<8x128xf32>
    %57 = arith.maximumf %55, %56 : vector<8x128xf32>
    %58 = vector.extract_strided_slice %51 {offsets = [0, 128], sizes = [8, 128], strides = [1, 1]} : vector<8x256xf32> to vector<8x128xf32>
    %59 = arith.truncf %57 : vector<8x128xf32> to vector<8x128xbf16>
    %c0_31 = arith.constant 0 : index
    %c0_32 = arith.constant 0 : index
    %60 = vector.load %arg13[%c0_31, %c0_32] : memref<128x128xbf16, #tpu.memory_space<vmem>>, vector<128x128xbf16>
    %cst_33 = arith.constant dense<0.000000e+00> : vector<8x128xf32>
    %61 = tpu.matmul %59, %60, %cst_33 {dimension_numbers = #tpu.dot_dimension_numbers<[1], [0], [0], [1], [0, 0, 1, 1], [], []>} : vector<8x128xbf16>, vector<128x128xbf16>, vector<8x128xf32> -> vector<8x128xf32>
    %62 = arith.addf %58, %61 : vector<8x128xf32>
    %c0_34 = arith.constant 0 : index
    %c0_35 = arith.constant 0 : index
    %63 = vector.load %arg14[%c0_34, %c0_35] : memref<8x128xf32, #tpu.memory_space<vmem>>, vector<8x128xf32>
    tpu.vector_store %arg14[%c0_34, %c0_35], %62 {strides = array<i32>} : memref<8x128xf32, #tpu.memory_space<vmem>>, vector<8x128xf32>,
    %c0_36 = arith.constant 0 : index
    %c0_37 = arith.constant 0 : index
    %64 = vector.load %arg15[%c0_36, %c0_37] : memref<8x128xbf16, #tpu.memory_space<vmem>>, vector<8x128xbf16>
    tpu.vector_store %arg15[%c0_36, %c0_37], %46 {strides = array<i32>} : memref<8x128xbf16, #tpu.memory_space<vmem>>, vector<8x128xbf16>,
    return
  }
  func.func @transform_0(%arg0: i32) -> (i32, i32) {
    %c0_i32 = arith.constant 0 : i32
    %c0_i32_0 = arith.constant 0 : i32
    return %arg0, %c0_i32 : i32, i32
  }
  func.func @transform_1(%arg0: i32) -> (i32, i32) {
    %c0_i32 = arith.constant 0 : i32
    %c0_i32_0 = arith.constant 0 : i32
    return %arg0, %c0_i32 : i32, i32
  }
  func.func @transform_2(%arg0: i32) -> (i32, i32) {
    %c0_i32 = arith.constant 0 : i32
    %c0_i32_0 = arith.constant 0 : i32
    return %arg0, %c0_i32 : i32, i32
  }
  func.func @transform_3(%arg0: i32) -> (i32, i32) {
    %c0_i32 = arith.constant 0 : i32
    %c0_i32_0 = arith.constant 0 : i32
    %c0_i32_1 = arith.constant 0 : i32
    return %c0_i32, %c0_i32_0 : i32, i32
  }
  func.func @transform_4(%arg0: i32) -> (i32, i32) {
    %c0_i32 = arith.constant 0 : i32
    %c0_i32_0 = arith.constant 0 : i32
    %c0_i32_1 = arith.constant 0 : i32
    return %c0_i32, %c0_i32_0 : i32, i32
  }
  func.func @transform_5(%arg0: i32) -> (i32, i32) {
    %c0_i32 = arith.constant 0 : i32
    %c0_i32_0 = arith.constant 0 : i32
    %c0_i32_1 = arith.constant 0 : i32
    return %c0_i32, %c0_i32_0 : i32, i32
  }
  func.func @transform_6(%arg0: i32) -> (i32, i32) {
    %c0_i32 = arith.constant 0 : i32
    %c0_i32_0 = arith.constant 0 : i32
    %c0_i32_1 = arith.constant 0 : i32
    return %c0_i32, %c0_i32_0 : i32, i32
  }
  func.func @transform_7(%arg0: i32) -> (i32, i32) {
    %c0_i32 = arith.constant 0 : i32
    %c0_i32_0 = arith.constant 0 : i32
    %c0_i32_1 = arith.constant 0 : i32
    return %c0_i32, %c0_i32_0 : i32, i32
  }
  func.func @transform_8(%arg0: i32) -> (i32, i32) {
    %c0_i32 = arith.constant 0 : i32
    %c0_i32_0 = arith.constant 0 : i32
    %c0_i32_1 = arith.constant 0 : i32
    return %c0_i32, %c0_i32_0 : i32, i32
  }
  func.func @transform_9(%arg0: i32) -> (i32, i32) {
    %c0_i32 = arith.constant 0 : i32
    %c0_i32_0 = arith.constant 0 : i32
    %c0_i32_1 = arith.constant 0 : i32
    return %c0_i32, %c0_i32_0 : i32, i32
  }
  func.func @transform_10(%arg0: i32) -> (i32, i32) {
    %c0_i32 = arith.constant 0 : i32
    %c0_i32_0 = arith.constant 0 : i32
    %c0_i32_1 = arith.constant 0 : i32
    return %c0_i32, %c0_i32_0 : i32, i32
  }
  func.func @transform_11(%arg0: i32) -> (i32, i32) {
    %c0_i32 = arith.constant 0 : i32
    %c0_i32_0 = arith.constant 0 : i32
    %c0_i32_1 = arith.constant 0 : i32
    return %c0_i32, %c0_i32_0 : i32, i32
  }
  func.func @transform_12(%arg0: i32) -> (i32, i32) {
    %c0_i32 = arith.constant 0 : i32
    %c0_i32_0 = arith.constant 0 : i32
    %c0_i32_1 = arith.constant 0 : i32
    return %c0_i32, %c0_i32_0 : i32, i32
  }
  func.func @transform_13(%arg0: i32) -> (i32, i32) {
    %c0_i32 = arith.constant 0 : i32
    %c0_i32_0 = arith.constant 0 : i32
    return %arg0, %c0_i32 : i32, i32
  }
  func.func @transform_14(%arg0: i32) -> (i32, i32) {
    %c0_i32 = arith.constant 0 : i32
    %c0_i32_0 = arith.constant 0 : i32
    return %arg0, %c0_i32 : i32, i32
  }
}

</mosaic_0001>

<llo_original>
// kernel: tpu_custom_call.1
$region0: #{tpu_custom_call.1}
  #allocation0 [shape = 'u32[]', space=smem, size = 0x4, offset = 0x4, fixed_abs, tag = 'smem constant byte address 0x4 - core index']
  #allocation1 [shape = 'u32[144,128]{1,0:T(1,128)}', space=vmem, size = 0x12000, scoped, tag = 'internal scratch']
  %s0 = inlined_call_operand.hbm [shape: bf16[8,16], index: 0, kind: input, shape index: {}]
  %s1 = inlined_call_operand.hbm [shape: bf16[8,128], index: 1, kind: input, shape index: {}]
  %s2 = inlined_call_operand.hbm [shape: bf16[8,8], index: 2, kind: input, shape index: {}]
  %s3 = inlined_call_operand.vmem [shape: bf16[16,128], index: 3, kind: input, shape index: {}]
  %s4 = inlined_call_operand.hbm [shape: f32[1,128], index: 4, kind: input, shape index: {}]
  %s5 = inlined_call_operand.hbm [shape: bf16[128,384], index: 5, kind: input, shape index: {}]
  %s6 = inlined_call_operand.vmem [shape: f32[1,384], index: 6, kind: input, shape index: {}]
  %s7 = inlined_call_operand.hbm [shape: bf16[128,384], index: 7, kind: input, shape index: {}]
  %s8 = inlined_call_operand.vmem [shape: f32[1,384], index: 8, kind: input, shape index: {}]
  %s9 = inlined_call_operand.hbm [shape: bf16[128,256], index: 9, kind: input, shape index: {}]
  %s10 = inlined_call_operand.vmem [shape: f32[1,256], index: 10, kind: input, shape index: {}]
  %s11 = inlined_call_operand.vmem [shape: bf16[8,128], index: 11, kind: input, shape index: {}]
  %s12 = inlined_call_operand.hbm [shape: bf16[128,128], index: 12, kind: input, shape index: {}]
  %s13 = inlined_call_operand.hbm [shape: f32[8,128], index: 13, kind: output, shape index: {0}]
  %s14 = inlined_call_operand.hbm [shape: bf16[8,128], index: 14, kind: output, shape index: {1}]
  %15 = xla_tuple %s13, %s14
  %s16 = sld [smem:[#allocation0]]
  $region102: #{tpu_custom_call.1} parent=0
    _
  %s18 = ssub.s32 1, %s16
  %s19 = scalar_select 0, %s18, %s16
  $region1: #{tpu_custom_call.1} parent=0
    #allocation2 [shape = 'u8[2048]{0}', space=vmem, size = 0x800, scoped, tag = 'input window, operand 0, single buffered']
    #allocation3 [shape = 's32[1]{0}', space=sflag, size = 0x4, scoped, tag = 'scoped memory for tpu_custom_call.1']
    #allocation4 [shape = 's32[1]{0}', space=sflag, size = 0x4, scoped, tag = 'scoped memory for tpu_custom_call.1']
    #allocation5 [shape = 'u8[2048]{0}', space=vmem, size = 0x800, scoped, tag = 'input window, operand 1, single buffered']
    #allocation6 [shape = 's32[1]{0}', space=sflag, size = 0x4, scoped, tag = 'scoped memory for tpu_custom_call.1']
    #allocation7 [shape = 'u8[2048]{0}', space=vmem, size = 0x800, scoped, tag = 'input window, operand 2, single buffered']
    #allocation8 [shape = 'u8[512]{0}', space=vmem, size = 0x400, scoped, tag = 'input window, operand 4, single buffered']
    #allocation9 [shape = 's32[1]{0}', space=sflag, size = 0x4, scoped, tag = 'scoped memory for tpu_custom_call.1']
    #allocation10 [shape = 'u8[98304]{0}', space=vmem, size = 0x18000, scoped, tag = 'input window, operand 5, single buffered']
    #allocation11 [shape = 'u8[98304]{0}', space=vmem, size = 0x18000, scoped, tag = 'input window, operand 7, single buffered']
    #allocation12 [shape = 's32[1]{0}', space=sflag, size = 0x4, scoped, tag = 'scoped memory for tpu_custom_call.1']
    #allocation13 [shape = 'u8[65536]{0}', space=vmem, size = 0x10000, scoped, tag = 'input window, operand 9, single buffered']
    #allocation14 [shape = 'u8[32768]{0}', space=vmem, size = 0x8000, scoped, tag = 'input window, operand 12, single buffered']
    #allocation15 [shape = 's32[1]{0}', space=sflag, size = 0x4, scoped, tag = 'scoped memory for tpu_custom_call.1']
    #allocation16 [shape = 'u8[4096]{0}', space=vmem, size = 0x1000, scoped, tag = 'output window, operand 0, single buffered']
    #allocation17 [shape = 'u8[2048]{0}', space=vmem, size = 0x800, scoped, tag = 'output window, operand 1, single buffered']
    #allocation18 [shape = 's32[1]{0}', space=sflag, size = 0x4, scoped, tag = 'scoped memory for tpu_custom_call.1']
    %20 = vsyncpa [#allocation3], 0
    %21 = vsyncpa [#allocation6], 0
    %22 = vsyncpa [#allocation9], 0
    %23 = vsyncpa [#allocation12], 0
    %24 = vsyncpa [#allocation15], 0
    %25 = vsyncpa [#allocation4], 0
    %26 = vsyncpa [#allocation18], 0
    // Predicated region
    $region2: #{tpu_custom_call.1} parent=1 // pred_check
      _
    $region3: #{tpu_custom_call.1} parent=1 // pred_check_branch
      %28 = sbr.rel (0) target = $region5
    $region4: #{tpu_custom_call.1} parent=1 // pred_region
      %s30 = ssub.s32 64, 64
      %31 = vsyncadd [#allocation3], %s30
      %s33 = sshll.u32 [#allocation2], 4
      %s34 = int_to_ptr.vmem [resolvable:$true] %s33
      %36 = dma.hbm_to_vmem [thread:$0]  %s0, 64, %s34, [#allocation3]
    $region5: #{tpu_custom_call.1} parent=1 // pred_fallthru
      _
    // Predicated region
    $region6: #{tpu_custom_call.1} parent=1 // pred_check
      _
    $region7: #{tpu_custom_call.1} parent=1 // pred_check_branch
      %38 = sbr.rel (0) target = $region9
    $region8: #{tpu_custom_call.1} parent=1 // pred_region
      %s40 = ssub.s32 64, 64
      %41 = vsyncadd [#allocation6], %s40
      %s43 = sshll.u32 [#allocation5], 4
      %s44 = int_to_ptr.vmem [resolvable:$true] %s43
      %46 = dma.hbm_to_vmem [thread:$0]  %s1, 64, %s44, [#allocation6]
    $region9: #{tpu_custom_call.1} parent=1 // pred_fallthru
      _
    // Predicated region
    $region10: #{tpu_custom_call.1} parent=1 // pred_check
      _
    $region11: #{tpu_custom_call.1} parent=1 // pred_check_branch
      %48 = sbr.rel (0) target = $region13
    $region12: #{tpu_custom_call.1} parent=1 // pred_region
      %s50 = ssub.s32 64, 64
      %51 = vsyncadd [#allocation6], %s50
      %s53 = sshll.u32 [#allocation7], 4
      %s54 = int_to_ptr.vmem [resolvable:$true] %s53
      %56 = dma.hbm_to_vmem [thread:$0]  %s2, 64, %s54, [#allocation6]
    $region13: #{tpu_custom_call.1} parent=1 // pred_fallthru
      _
    // Predicated region
    $region14: #{tpu_custom_call.1} parent=1 // pred_check
      _
    $region15: #{tpu_custom_call.1} parent=1 // pred_check_branch
      %58 = sbr.rel (0) target = $region17
    $region16: #{tpu_custom_call.1} parent=1 // pred_region
      _
    $region17: #{tpu_custom_call.1} parent=1 // pred_fallthru
      _
    // Predicated region
    $region18: #{tpu_custom_call.1} parent=1 // pred_check
      _
    $region19: #{tpu_custom_call.1} parent=1 // pred_check_branch
      %60 = sbr.rel (0) target = $region21
    $region20: #{tpu_custom_call.1} parent=1 // pred_region
      %s62 = ssub.s32 16, 16
      %63 = vsyncadd [#allocation9], %s62
      %s65 = sshll.u32 [#allocation8], 4
      %s66 = int_to_ptr.vmem [resolvable:$true] %s65
      %68 = dma.hbm_to_vmem [thread:$0]  %s4, 16, %s66, [#allocation9]
    $region21: #{tpu_custom_call.1} parent=1 // pred_fallthru
      _
    // Predicated region
    $region22: #{tpu_custom_call.1} parent=1 // pred_check
      _
    $region23: #{tpu_custom_call.1} parent=1 // pred_check_branch
      %70 = sbr.rel (0) target = $region25
    $region24: #{tpu_custom_call.1} parent=1 // pred_region
      %s72 = ssub.s32 3072, 3072
      %73 = vsyncadd [#allocation9], %s72
      %s74 = sshll.u32 [#allocation10], 4
      %s75 = int_to_ptr.vmem [resolvable:$true] %s74
      %80 = dma.hbm_to_vmem [thread:$0]  %s5, 3072, %s75, [#allocation9], 192, 192, 12
    $region25: #{tpu_custom_call.1} parent=1 // pred_fallthru
      _
    // Predicated region
    $region26: #{tpu_custom_call.1} parent=1 // pred_check
      _
    $region27: #{tpu_custom_call.1} parent=1 // pred_check_branch
      %82 = sbr.rel (0) target = $region29
    $region28: #{tpu_custom_call.1} parent=1 // pred_region
      _
    $region29: #{tpu_custom_call.1} parent=1 // pred_fallthru
      _
    // Predicated region
    $region30: #{tpu_custom_call.1} parent=1 // pred_check
      _
    $region31: #{tpu_custom_call.1} parent=1 // pred_check_branch
      %84 = sbr.rel (0) target = $region33
    $region32: #{tpu_custom_call.1} parent=1 // pred_region
      %s86 = ssub.s32 3072, 3072
      %87 = vsyncadd [#allocation12], %s86
      %s88 = sshll.u32 [#allocation11], 4
      %s89 = int_to_ptr.vmem [resolvable:$true] %s88
      %94 = dma.hbm_to_vmem [thread:$0]  %s7, 3072, %s89, [#allocation12], 192, 192, 12
    $region33: #{tpu_custom_call.1} parent=1 // pred_fallthru
      _
    // Predicated region
    $region34: #{tpu_custom_call.1} parent=1 // pred_check
      _
    $region35: #{tpu_custom_call.1} parent=1 // pred_check_branch
      %96 = sbr.rel (0) target = $region37
    $region36: #{tpu_custom_call.1} parent=1 // pred_region
      _
    $region37: #{tpu_custom_call.1} parent=1 // pred_fallthru
      _
    // Predicated region
    $region38: #{tpu_custom_call.1} parent=1 // pred_check
      _
    $region39: #{tpu_custom_call.1} parent=1 // pred_check_branch
      %98 = sbr.rel (0) target = $region41
    $region40: #{tpu_custom_call.1} parent=1 // pred_region
      %s100 = ssub.s32 2048, 2048
      %101 = vsyncadd [#allocation12], %s100
      %s102 = sshll.u32 [#allocation13], 4
      %s103 = int_to_ptr.vmem [resolvable:$true] %s102
      %108 = dma.hbm_to_vmem [thread:$0]  %s9, 2048, %s103, [#allocation12], 128, 128, 8
    $region41: #{tpu_custom_call.1} parent=1 // pred_fallthru
      _
    // Predicated region
    $region42: #{tpu_custom_call.1} parent=1 // pred_check
      _
    $region43: #{tpu_custom_call.1} parent=1 // pred_check_branch
      %110 = sbr.rel (0) target = $region45
    $region44: #{tpu_custom_call.1} parent=1 // pred_region
      _
    $region45: #{tpu_custom_call.1} parent=1 // pred_fallthru
      _
    // Predicated region
    $region46: #{tpu_custom_call.1} parent=1 // pred_check
      _
    $region47: #{tpu_custom_call.1} parent=1 // pred_check_branch
      %112 = sbr.rel (0) target = $region49
    $region48: #{tpu_custom_call.1} parent=1 // pred_region
      _
    $region49: #{tpu_custom_call.1} parent=1 // pred_fallthru
      _
    // Predicated region
    $region50: #{tpu_custom_call.1} parent=1 // pred_check
      _
    $region51: #{tpu_custom_call.1} parent=1 // pred_check_branch
      %114 = sbr.rel (0) target = $region53
    $region52: #{tpu_custom_call.1} parent=1 // pred_region
      %s116 = ssub.s32 1024, 1024
      %117 = vsyncadd [#allocation15], %s116
      %s118 = sshll.u32 [#allocation14], 4
      %s119 = int_to_ptr.vmem [resolvable:$true] %s118
      %124 = dma.hbm_to_vmem [thread:$0]  %s12, 1024, %s119, [#allocation15], 64, 64, 4
    $region53: #{tpu_custom_call.1} parent=1 // pred_fallthru
      _
    // Predicated region
    $region54: #{tpu_custom_call.1} parent=1 // pred_check
      _
    $region55: #{tpu_custom_call.1} parent=1 // pred_check_branch
      %126 = sbr.rel (0) target = $region57
    $region56: #{tpu_custom_call.1} parent=1 // pred_region
      %127 = dma.done [#allocation3], 64
    $region57: #{tpu_custom_call.1} parent=1 // pred_fallthru
      _
    // Predicated region
    $region58: #{tpu_custom_call.1} parent=1 // pred_check
      _
    $region59: #{tpu_custom_call.1} parent=1 // pred_check_branch
      %129 = sbr.rel (0) target = $region61
    $region60: #{tpu_custom_call.1} parent=1 // pred_region
      %130 = dma.done [#allocation6], 64
    $region61: #{tpu_custom_call.1} parent=1 // pred_fallthru
      _
    // Predicated region
    $region62: #{tpu_custom_call.1} parent=1 // pred_check
      _
    $region63: #{tpu_custom_call.1} parent=1 // pred_check_branch
      %132 = sbr.rel (0) target = $region65
    $region64: #{tpu_custom_call.1} parent=1 // pred_region
      %133 = dma.done [#allocation6], 64
    $region65: #{tpu_custom_call.1} parent=1 // pred_fallthru
      _
    // Predicated region
    $region66: #{tpu_custom_call.1} parent=1 // pred_check
      _
    $region67: #{tpu_custom_call.1} parent=1 // pred_check_branch
      %135 = sbr.rel (0) target = $region69
    $region68: #{tpu_custom_call.1} parent=1 // pred_region
      %136 = dma.done [#allocation9], 16
    $region69: #{tpu_custom_call.1} parent=1 // pred_fallthru
      _
    // Predicated region
    $region70: #{tpu_custom_call.1} parent=1 // pred_check
      _
    $region71: #{tpu_custom_call.1} parent=1 // pred_check_branch
      %138 = sbr.rel (0) target = $region73
    $region72: #{tpu_custom_call.1} parent=1 // pred_region
      %139 = dma.done [#allocation9], 3072
    $region73: #{tpu_custom_call.1} parent=1 // pred_fallthru
      _
    // Predicated region
    $region74: #{tpu_custom_call.1} parent=1 // pred_check
      _
    $region75: #{tpu_custom_call.1} parent=1 // pred_check_branch
      %141 = sbr.rel (0) target = $region77
    $region76: #{tpu_custom_call.1} parent=1 // pred_region
      %142 = dma.done [#allocation12], 3072
    $region77: #{tpu_custom_call.1} parent=1 // pred_fallthru
      _
    // Predicated region
    $region78: #{tpu_custom_call.1} parent=1 // pred_check
      _
    $region79: #{tpu_custom_call.1} parent=1 // pred_check_branch
      %144 = sbr.rel (0) target = $region81
    $region80: #{tpu_custom_call.1} parent=1 // pred_region
      %145 = dma.done [#allocation12], 2048
    $region81: #{tpu_custom_call.1} parent=1 // pred_fallthru
      _
    // Predicated region
    $region82: #{tpu_custom_call.1} parent=1 // pred_check
      _
    $region83: #{tpu_custom_call.1} parent=1 // pred_check_branch
      %147 = sbr.rel (0) target = $region85
    $region84: #{tpu_custom_call.1} parent=1 // pred_region
      %148 = dma.done [#allocation15], 1024
    $region85: #{tpu_custom_call.1} parent=1 // pred_fallthru
      _
    %v150 = vld [vmem:[#allocation2] sm:$0xf]
    %v151 = vld [vmem:[#allocation5] sm:$0xf]
    %v152 = vld [vmem:[#allocation7] sm:$0xf]
    %v153 = vunpack.c.l.bf16 %v151
    %v154 = vld [vmem:[%s3] sm:$0xf]
    %v155 = vld [vmem:[%s3 + $0x4] sm:$0xf]
    %v156 = vld [vmem:[#allocation8] sm:$0x1]
    %v158 = vlaneseq
    %v159 = vshrl.u32 %v158, 7
    %v160 = vsub.s32 0, %v159
    %v161 = vrot.slane %v156, %v160
    %v165 = vunpack.c.l.b16 %v154
    %v166 = vunpack.c.l.b16 %v155
    %v167 = vpack.c.b16 %v166, %v165
    %vm169 = vcmask 130048
    %v171 = vsel %vm169, %v150, 0
    %173 = vmatprep.subr.bf16.mxu0 0
    %174 = vmatpush1.bf16.msra.mxu0 %v167
    %175 = vmatprep.subr.bf16.mxu0 0
    %176 = vmatpush1.bf16.msra.mxu0 0
    %177 = vmatprep.subr.bf16.mxu0 0
    %178 = vmatpush1.bf16.msra.mxu0 0
    %179 = vmatprep.subr.bf16.mxu0 0
    %180 = vmatpush1.bf16.msra.mxu0 0
    %181 = vmatprep.subr.bf16.mxu0 0
    %182 = vmatpush1.bf16.msra.mxu0 0
    %183 = vmatprep.subr.bf16.mxu0 0
    %184 = vmatpush1.bf16.msra.mxu0 0
    %185 = vmatprep.subr.bf16.mxu0 0
    %186 = vmatpush1.bf16.msra.mxu0 0
    %187 = vmatprep.subr.bf16.mxu0 0
    %188 = vmatpush1.bf16.msra.mxu0 0
    %189 = vmatprep.subr.bf16.mxu0 0
    %190 = vmatpush1.bf16.msra.mxu0 0
    %191 = vmatprep.subr.bf16.mxu0 0
    %192 = vmatpush1.bf16.msra.mxu0 0
    %193 = vmatprep.subr.bf16.mxu0 0
    %194 = vmatpush1.bf16.msra.mxu0 0
    %195 = vmatprep.subr.bf16.mxu0 0
    %196 = vmatpush1.bf16.msra.mxu0 0
    %197 = vmatprep.subr.bf16.mxu0 0
    %198 = vmatpush1.bf16.msra.mxu0 0
    %199 = vmatprep.subr.bf16.mxu0 0
    %200 = vmatpush1.bf16.msra.mxu0 0
    %201 = vmatprep.subr.bf16.mxu0 0
    %202 = vmatpush1.bf16.msra.mxu0 0
    %203 = vmatprep.subr.bf16.mxu0 0
    %204 = vmatpush1.bf16.msra.mxu0 0
    %205 = vmatprep.mubr.bf16.mxu0 0
    %206 = vmatmul.mubr.bf16.gmra.mrb[0].mxu0 %v171
    %v207 = vpop.f32.mrb[0].mxu0
    %v208 = vadd.f32 %v161, %v207
    %v209 = vpop.f32.mrb[0].mxu0
    %v210 = vpop.f32.mrb[0].mxu0
    %v211 = vpop.f32.mrb[0].mxu0
    %212 = vdwg.mxu0
    %v213 = vmax.f32 %v208, 0.0
    %v214 = vpack.c.bf16 %v213, %v213
    %v215 = vld [vmem:[#allocation10] sm:$0xff]
    %v216 = vld [vmem:[#allocation10 + $0x8] sm:$0xf]
    %v217 = vld [vmem:[#allocation10 + $0xc] sm:$0xff]
    %v218 = vld [vmem:[#allocation10 + $0x14] sm:$0xf]
    %v219 = vld [vmem:[#allocation10 + $0x18] sm:$0xff]
    %v220 = vld [vmem:[#allocation10 + $0x20] sm:$0xf]
    %v221 = vld [vmem:[#allocation10 + $0x24] sm:$0xff]
    %v222 = vld [vmem:[#allocation10 + $0x2c] sm:$0xf]
    %v223 = vld [vmem:[#allocation10 + $0x30] sm:$0xff]
    %v224 = vld [vmem:[#allocation10 + $0x38] sm:$0xf]
    %v225 = vld [vmem:[#allocation10 + $0x3c] sm:$0xff]
    %v226 = vld [vmem:[#allocation10 + $0x44] sm:$0xf]
    %v227 = vld [vmem:[#allocation10 + $0x48] sm:$0xff]
    %v228 = vld [vmem:[#allocation10 + $0x50] sm:$0xf]
    %v229 = vld [vmem:[#allocation10 + $0x54] sm:$0xff]
    %v230 = vld [vmem:[#allocation10 + $0x5c] sm:$0xf]
    %v231 = vld [vmem:[#allocation10 + $0x60] sm:$0xff]
    %v232 = vld [vmem:[#allocation10 + $0x68] sm:$0xf]
    %v233 = vld [vmem:[#allocation10 + $0x6c] sm:$0xff]
    %v234 = vld [vmem:[#allocation10 + $0x74] sm:$0xf]
    %v235 = vld [vmem:[#allocation10 + $0x78] sm:$0xff]
    %v236 = vld [vmem:[#allocation10 + $0x80] sm:$0xf]
    %v237 = vld [vmem:[#allocation10 + $0x84] sm:$0xff]
    %v238 = vld [vmem:[#allocation10 + $0x8c] sm:$0xf]
    %v239 = vld [vmem:[#allocation10 + $0x90] sm:$0xff]
    %v240 = vld [vmem:[#allocation10 + $0x98] sm:$0xf]
    %v241 = vld [vmem:[#allocation10 + $0x9c] sm:$0xff]
    %v242 = vld [vmem:[#allocation10 + $0xa4] sm:$0xf]
    %v243 = vld [vmem:[#allocation10 + $0xa8] sm:$0xff]
    %v244 = vld [vmem:[#allocation10 + $0xb0] sm:$0xf]
    %v245 = vld [vmem:[#allocation10 + $0xb4] sm:$0xff]
    %v246 = vld [vmem:[#allocation10 + $0xbc] sm:$0xf]
    %v247 = vld [vmem:[%s6] sm:$0x7]
    %v249 = vlaneseq
    %v250 = vshrl.u32 %v249, 7
    %v251 = vsub.s32 0, %v250
    %v252 = vrot.slane %v247, %v251
    %v253 = vlaneseq
    %v254 = vshrl.u32 %v253, 7
    %v255 = vsub.s32 1, %v254
    %v256 = vrot.slane %v247, %v255
    %v257 = vlaneseq
    %v258 = vshrl.u32 %v257, 7
    %v259 = vsub.s32 2, %v258
    %v260 = vrot.slane %v247, %v259
    %v296 = vunpack.c.l.b16 %v215
    %v297 = vunpack.c.h.b16 %v215
    %v298 = vunpack.c.l.b16 %v216
    %v299 = vunpack.c.l.b16 %v217
    %v300 = vunpack.c.h.b16 %v217
    %v301 = vunpack.c.l.b16 %v218
    %v302 = vunpack.c.l.b16 %v219
    %v303 = vunpack.c.h.b16 %v219
    %v304 = vunpack.c.l.b16 %v220
    %v305 = vunpack.c.l.b16 %v221
    %v306 = vunpack.c.h.b16 %v221
    %v307 = vunpack.c.l.b16 %v222
    %v308 = vunpack.c.l.b16 %v223
    %v309 = vunpack.c.h.b16 %v223
    %v310 = vunpack.c.l.b16 %v224
    %v311 = vunpack.c.l.b16 %v225
    %v312 = vunpack.c.h.b16 %v225
    %v313 = vunpack.c.l.b16 %v226
    %v314 = vunpack.c.l.b16 %v227
    %v315 = vunpack.c.h.b16 %v227
    %v316 = vunpack.c.l.b16 %v228
    %v317 = vunpack.c.l.b16 %v229
    %v318 = vunpack.c.h.b16 %v229
    %v319 = vunpack.c.l.b16 %v230
    %v320 = vunpack.c.l.b16 %v231
    %v321 = vunpack.c.h.b16 %v231
    %v322 = vunpack.c.l.b16 %v232
    %v323 = vunpack.c.l.b16 %v233
    %v324 = vunpack.c.h.b16 %v233
    %v325 = vunpack.c.l.b16 %v234
    %v326 = vunpack.c.l.b16 %v235
    %v327 = vunpack.c.h.b16 %v235
    %v328 = vunpack.c.l.b16 %v236
    %v329 = vunpack.c.l.b16 %v237
    %v330 = vunpack.c.h.b16 %v237
    %v331 = vunpack.c.l.b16 %v238
    %v332 = vunpack.c.l.b16 %v239
    %v333 = vunpack.c.h.b16 %v239
    %v334 = vunpack.c.l.b16 %v240
    %v335 = vunpack.c.l.b16 %v241
    %v336 = vunpack.c.h.b16 %v241
    %v337 = vunpack.c.l.b16 %v242
    %v338 = vunpack.c.l.b16 %v243
    %v339 = vunpack.c.h.b16 %v243
    %v340 = vunpack.c.l.b16 %v244
    %v341 = vunpack.c.l.b16 %v245
    %v342 = vunpack.c.h.b16 %v245
    %v343 = vunpack.c.l.b16 %v246
    %v344 = vpack.c.b16 %v299, %v296
    %v345 = vpack.c.b16 %v300, %v297
    %v346 = vpack.c.b16 %v301, %v298
    %v347 = vpack.c.b16 %v305, %v302
    %v348 = vpack.c.b16 %v306, %v303
    %v349 = vpack.c.b16 %v307, %v304
    %v350 = vpack.c.b16 %v311, %v308
    %v351 = vpack.c.b16 %v312, %v309
    %v352 = vpack.c.b16 %v313, %v310
    %v353 = vpack.c.b16 %v317, %v314
    %v354 = vpack.c.b16 %v318, %v315
    %v355 = vpack.c.b16 %v319, %v316
    %v356 = vpack.c.b16 %v323, %v320
    %v357 = vpack.c.b16 %v324, %v321
    %v358 = vpack.c.b16 %v325, %v322
    %v359 = vpack.c.b16 %v329, %v326
    %v360 = vpack.c.b16 %v330, %v327
    %v361 = vpack.c.b16 %v331, %v328
    %v362 = vpack.c.b16 %v335, %v332
    %v363 = vpack.c.b16 %v336, %v333
    %v364 = vpack.c.b16 %v337, %v334
    %v365 = vpack.c.b16 %v341, %v338
    %v366 = vpack.c.b16 %v342, %v339
    %v367 = vpack.c.b16 %v343, %v340
    %392 = vmatprep.subr.bf16.mxu0 %v345
    %393 = vmatpush1.bf16.msra.mxu0 %v344
    %394 = vmatprep.subr.bf16.mxu0 %v348
    %395 = vmatpush1.bf16.msra.mxu0 %v347
    %396 = vmatprep.subr.bf16.mxu0 %v351
    %397 = vmatpush1.bf16.msra.mxu0 %v350
    %398 = vmatprep.subr.bf16.mxu0 %v354
    %399 = vmatpush1.bf16.msra.mxu0 %v353
    %400 = vmatprep.subr.bf16.mxu0 %v357
    %401 = vmatpush1.bf16.msra.mxu0 %v356
    %402 = vmatprep.subr.bf16.mxu0 %v360
    %403 = vmatpush1.bf16.msra.mxu0 %v359
    %404 = vmatprep.subr.bf16.mxu0 %v363
    %405 = vmatpush1.bf16.msra.mxu0 %v362
    %406 = vmatprep.subr.bf16.mxu0 %v366
    %407 = vmatpush1.bf16.msra.mxu0 %v365
    %408 = vmatprep.subr.bf16.mxu0 0
    %409 = vmatpush1.bf16.msra.mxu0 0
    %410 = vmatprep.subr.bf16.mxu0 0
    %411 = vmatpush1.bf16.msra.mxu0 0
    %412 = vmatprep.subr.bf16.mxu0 0
    %413 = vmatpush1.bf16.msra.mxu0 0
    %414 = vmatprep.subr.bf16.mxu0 0
    %415 = vmatpush1.bf16.msra.mxu0 0
    %416 = vmatprep.subr.bf16.mxu0 0
    %417 = vmatpush1.bf16.msra.mxu0 0
    %418 = vmatprep.subr.bf16.mxu0 0
    %419 = vmatpush1.bf16.msra.mxu0 0
    %420 = vmatprep.subr.bf16.mxu0 0
    %421 = vmatpush1.bf16.msra.mxu0 0
    %422 = vmatprep.subr.bf16.mxu0 0
    %423 = vmatpush1.bf16.msra.mxu0 0
    %424 = vmatprep.mubr.bf16.mxu0 0
    %425 = vmatmul.mubr.bf16.gmra.mrb[0].mxu0 %v214
    %v426 = vpop.f32.mrb[0].mxu0
    %v427 = vadd.f32 %v252, %v426
    %v428 = vpop.f32.mrb[0].mxu0
    %v429 = vadd.f32 %v256, %v428
    %v430 = vpop.f32.mrb[0].mxu0
    %v431 = vpop.f32.mrb[0].mxu0
    %432 = vdwg.mxu0
    %433 = vmatprep.subr.bf16.mxu0 0
    %434 = vmatpush1.bf16.msra.mxu0 %v346
    %435 = vmatprep.subr.bf16.mxu0 0
    %436 = vmatpush1.bf16.msra.mxu0 %v349
    %437 = vmatprep.subr.bf16.mxu0 0
    %438 = vmatpush1.bf16.msra.mxu0 %v352
    %439 = vmatprep.subr.bf16.mxu0 0
    %440 = vmatpush1.bf16.msra.mxu0 %v355
    %441 = vmatprep.subr.bf16.mxu0 0
    %442 = vmatpush1.bf16.msra.mxu0 %v358
    %443 = vmatprep.subr.bf16.mxu0 0
    %444 = vmatpush1.bf16.msra.mxu0 %v361
    %445 = vmatprep.subr.bf16.mxu0 0
    %446 = vmatpush1.bf16.msra.mxu0 %v364
    %447 = vmatprep.subr.bf16.mxu0 0
    %448 = vmatpush1.bf16.msra.mxu0 %v367
    %449 = vmatprep.subr.bf16.mxu0 0
    %450 = vmatpush1.bf16.msra.mxu0 0
    %451 = vmatprep.subr.bf16.mxu0 0
    %452 = vmatpush1.bf16.msra.mxu0 0
    %453 = vmatprep.subr.bf16.mxu0 0
    %454 = vmatpush1.bf16.msra.mxu0 0
    %455 = vmatprep.subr.bf16.mxu0 0
    %456 = vmatpush1.bf16.msra.mxu0 0
    %457 = vmatprep.subr.bf16.mxu0 0
    %458 = vmatpush1.bf16.msra.mxu0 0
    %459 = vmatprep.subr.bf16.mxu0 0
    %460 = vmatpush1.bf16.msra.mxu0 0
    %461 = vmatprep.subr.bf16.mxu0 0
    %462 = vmatpush1.bf16.msra.mxu0 0
    %463 = vmatprep.subr.bf16.mxu0 0
    %464 = vmatpush1.bf16.msra.mxu0 0
    %465 = vmatprep.mubr.bf16.mxu0 0
    %466 = vmatmul.mubr.bf16.gmra.mrb[0].mxu0 %v214
    %v467 = vpop.f32.mrb[0].mxu0
    %v468 = vadd.f32 %v260, %v467
    %v469 = vpop.f32.mrb[0].mxu0
    %v470 = vpop.f32.mrb[0].mxu0
    %v471 = vpop.f32.mrb[0].mxu0
    %472 = vdwg.mxu0
    %v473 = vld [vmem:[#allocation11] sm:$0xff]
    %v474 = vld [vmem:[#allocation11 + $0x8] sm:$0xf]
    %v475 = vld [vmem:[#allocation11 + $0xc] sm:$0xff]
    %v476 = vld [vmem:[#allocation11 + $0x14] sm:$0xf]
    %v477 = vld [vmem:[#allocation11 + $0x18] sm:$0xff]
    %v478 = vld [vmem:[#allocation11 + $0x20] sm:$0xf]
    %v479 = vld [vmem:[#allocation11 + $0x24] sm:$0xff]
    %v480 = vld [vmem:[#allocation11 + $0x2c] sm:$0xf]
    %v481 = vld [vmem:[#allocation11 + $0x30] sm:$0xff]
    %v482 = vld [vmem:[#allocation11 + $0x38] sm:$0xf]
    %v483 = vld [vmem:[#allocation11 + $0x3c] sm:$0xff]
    %v484 = vld [vmem:[#allocation11 + $0x44] sm:$0xf]
    %v485 = vld [vmem:[#allocation11 + $0x48] sm:$0xff]
    %v486 = vld [vmem:[#allocation11 + $0x50] sm:$0xf]
    %v487 = vld [vmem:[#allocation11 + $0x54] sm:$0xff]
    %v488 = vld [vmem:[#allocation11 + $0x5c] sm:$0xf]
    %v489 = vld [vmem:[#allocation11 + $0x60] sm:$0xff]
    %v490 = vld [vmem:[#allocation11 + $0x68] sm:$0xf]
    %v491 = vld [vmem:[#allocation11 + $0x6c] sm:$0xff]
    %v492 = vld [vmem:[#allocation11 + $0x74] sm:$0xf]
    %v493 = vld [vmem:[#allocation11 + $0x78] sm:$0xff]
    %v494 = vld [vmem:[#allocation11 + $0x80] sm:$0xf]
    %v495 = vld [vmem:[#allocation11 + $0x84] sm:$0xff]
    %v496 = vld [vmem:[#allocation11 + $0x8c] sm:$0xf]
    %v497 = vld [vmem:[#allocation11 + $0x90] sm:$0xff]
    %v498 = vld [vmem:[#allocation11 + $0x98] sm:$0xf]
    %v499 = vld [vmem:[#allocation11 + $0x9c] sm:$0xff]
    %v500 = vld [vmem:[#allocation11 + $0xa4] sm:$0xf]
    %v501 = vld [vmem:[#allocation11 + $0xa8] sm:$0xff]
    %v502 = vld [vmem:[#allocation11 + $0xb0] sm:$0xf]
    %v503 = vld [vmem:[#allocation11 + $0xb4] sm:$0xff]
    %v504 = vld [vmem:[#allocation11 + $0xbc] sm:$0xf]
    %v505 = vld [vmem:[%s8] sm:$0x7]
    %v507 = vlaneseq
    %v508 = vshrl.u32 %v507, 7
    %v509 = vsub.s32 0, %v508
    %v510 = vrot.slane %v505, %v509
    %v511 = vlaneseq
    %v512 = vshrl.u32 %v511, 7
    %v513 = vsub.s32 1, %v512
    %v514 = vrot.slane %v505, %v513
    %v515 = vlaneseq
    %v516 = vshrl.u32 %v515, 7
    %v517 = vsub.s32 2, %v516
    %v518 = vrot.slane %v505, %v517
    %v554 = vunpack.c.l.b16 %v473
    %v555 = vunpack.c.h.b16 %v473
    %v556 = vunpack.c.l.b16 %v474
    %v557 = vunpack.c.l.b16 %v475
    %v558 = vunpack.c.h.b16 %v475
    %v559 = vunpack.c.l.b16 %v476
    %v560 = vunpack.c.l.b16 %v477
    %v561 = vunpack.c.h.b16 %v477
    %v562 = vunpack.c.l.b16 %v478
    %v563 = vunpack.c.l.b16 %v479
    %v564 = vunpack.c.h.b16 %v479
    %v565 = vunpack.c.l.b16 %v480
    %v566 = vunpack.c.l.b16 %v481
    %v567 = vunpack.c.h.b16 %v481
    %v568 = vunpack.c.l.b16 %v482
    %v569 = vunpack.c.l.b16 %v483
    %v570 = vunpack.c.h.b16 %v483
    %v571 = vunpack.c.l.b16 %v484
    %v572 = vunpack.c.l.b16 %v485
    %v573 = vunpack.c.h.b16 %v485
    %v574 = vunpack.c.l.b16 %v486
    %v575 = vunpack.c.l.b16 %v487
    %v576 = vunpack.c.h.b16 %v487
    %v577 = vunpack.c.l.b16 %v488
    %v578 = vunpack.c.l.b16 %v489
    %v579 = vunpack.c.h.b16 %v489
    %v580 = vunpack.c.l.b16 %v490
    %v581 = vunpack.c.l.b16 %v491
    %v582 = vunpack.c.h.b16 %v491
    %v583 = vunpack.c.l.b16 %v492
    %v584 = vunpack.c.l.b16 %v493
    %v585 = vunpack.c.h.b16 %v493
    %v586 = vunpack.c.l.b16 %v494
    %v587 = vunpack.c.l.b16 %v495
    %v588 = vunpack.c.h.b16 %v495
    %v589 = vunpack.c.l.b16 %v496
    %v590 = vunpack.c.l.b16 %v497
    %v591 = vunpack.c.h.b16 %v497
    %v592 = vunpack.c.l.b16 %v498
    %v593 = vunpack.c.l.b16 %v499
    %v594 = vunpack.c.h.b16 %v499
    %v595 = vunpack.c.l.b16 %v500
    %v596 = vunpack.c.l.b16 %v501
    %v597 = vunpack.c.h.b16 %v501
    %v598 = vunpack.c.l.b16 %v502
    %v599 = vunpack.c.l.b16 %v503
    %v600 = vunpack.c.h.b16 %v503
    %v601 = vunpack.c.l.b16 %v504
    %v602 = vpack.c.b16 %v557, %v554
    %v603 = vpack.c.b16 %v558, %v555
    %v604 = vpack.c.b16 %v559, %v556
    %v605 = vpack.c.b16 %v563, %v560
    %v606 = vpack.c.b16 %v564, %v561
    %v607 = vpack.c.b16 %v565, %v562
    %v608 = vpack.c.b16 %v569, %v566
    %v609 = vpack.c.b16 %v570, %v567
    %v610 = vpack.c.b16 %v571, %v568
    %v611 = vpack.c.b16 %v575, %v572
    %v612 = vpack.c.b16 %v576, %v573
    %v613 = vpack.c.b16 %v577, %v574
    %v614 = vpack.c.b16 %v581, %v578
    %v615 = vpack.c.b16 %v582, %v579
    %v616 = vpack.c.b16 %v583, %v580
    %v617 = vpack.c.b16 %v587, %v584
    %v618 = vpack.c.b16 %v588, %v585
    %v619 = vpack.c.b16 %v589, %v586
    %v620 = vpack.c.b16 %v593, %v590
    %v621 = vpack.c.b16 %v594, %v591
    %v622 = vpack.c.b16 %v595, %v592
    %v623 = vpack.c.b16 %v599, %v596
    %v624 = vpack.c.b16 %v600, %v597
    %v625 = vpack.c.b16 %v601, %v598
    %650 = vmatprep.subr.bf16.mxu0 %v603
    %651 = vmatpush1.bf16.msra.mxu0 %v602
    %652 = vmatprep.subr.bf16.mxu0 %v606
    %653 = vmatpush1.bf16.msra.mxu0 %v605
    %654 = vmatprep.subr.bf16.mxu0 %v609
    %655 = vmatpush1.bf16.msra.mxu0 %v608
    %656 = vmatprep.subr.bf16.mxu0 %v612
    %657 = vmatpush1.bf16.msra.mxu0 %v611
    %658 = vmatprep.subr.bf16.mxu0 %v615
    %659 = vmatpush1.bf16.msra.mxu0 %v614
    %660 = vmatprep.subr.bf16.mxu0 %v618
    %661 = vmatpush1.bf16.msra.mxu0 %v617
    %662 = vmatprep.subr.bf16.mxu0 %v621
    %663 = vmatpush1.bf16.msra.mxu0 %v620
    %664 = vmatprep.subr.bf16.mxu0 %v624
    %665 = vmatpush1.bf16.msra.mxu0 %v623
    %666 = vmatprep.subr.bf16.mxu0 0
    %667 = vmatpush1.bf16.msra.mxu0 0
    %668 = vmatprep.subr.bf16.mxu0 0
    %669 = vmatpush1.bf16.msra.mxu0 0
    %670 = vmatprep.subr.bf16.mxu0 0
    %671 = vmatpush1.bf16.msra.mxu0 0
    %672 = vmatprep.subr.bf16.mxu0 0
    %673 = vmatpush1.bf16.msra.mxu0 0
    %674 = vmatprep.subr.bf16.mxu0 0
    %675 = vmatpush1.bf16.msra.mxu0 0
    %676 = vmatprep.subr.bf16.mxu0 0
    %677 = vmatpush1.bf16.msra.mxu0 0
    %678 = vmatprep.subr.bf16.mxu0 0
    %679 = vmatpush1.bf16.msra.mxu0 0
    %680 = vmatprep.subr.bf16.mxu0 0
    %681 = vmatpush1.bf16.msra.mxu0 0
    %682 = vmatprep.mubr.bf16.mxu0 0
    %683 = vmatmul.mubr.bf16.gmra.mrb[0].mxu0 %v151
    %v684 = vpop.f32.mrb[0].mxu0
    %v685 = vadd.f32 %v510, %v684
    %v686 = vpop.f32.mrb[0].mxu0
    %v687 = vadd.f32 %v514, %v686
    %v688 = vpop.f32.mrb[0].mxu0
    %v689 = vpop.f32.mrb[0].mxu0
    %690 = vdwg.mxu0
    %691 = vmatprep.subr.bf16.mxu0 0
    %692 = vmatpush1.bf16.msra.mxu0 %v604
    %693 = vmatprep.subr.bf16.mxu0 0
    %694 = vmatpush1.bf16.msra.mxu0 %v607
    %695 = vmatprep.subr.bf16.mxu0 0
    %696 = vmatpush1.bf16.msra.mxu0 %v610
    %697 = vmatprep.subr.bf16.mxu0 0
    %698 = vmatpush1.bf16.msra.mxu0 %v613
    %699 = vmatprep.subr.bf16.mxu0 0
    %700 = vmatpush1.bf16.msra.mxu0 %v616
    %701 = vmatprep.subr.bf16.mxu0 0
    %702 = vmatpush1.bf16.msra.mxu0 %v619
    %703 = vmatprep.subr.bf16.mxu0 0
    %704 = vmatpush1.bf16.msra.mxu0 %v622
    %705 = vmatprep.subr.bf16.mxu0 0
    %706 = vmatpush1.bf16.msra.mxu0 %v625
    %707 = vmatprep.subr.bf16.mxu0 0
    %708 = vmatpush1.bf16.msra.mxu0 0
    %709 = vmatprep.subr.bf16.mxu0 0
    %710 = vmatpush1.bf16.msra.mxu0 0
    %711 = vmatprep.subr.bf16.mxu0 0
    %712 = vmatpush1.bf16.msra.mxu0 0
    %713 = vmatprep.subr.bf16.mxu0 0
    %714 = vmatpush1.bf16.msra.mxu0 0
    %715 = vmatprep.subr.bf16.mxu0 0
    %716 = vmatpush1.bf16.msra.mxu0 0
    %717 = vmatprep.subr.bf16.mxu0 0
    %718 = vmatpush1.bf16.msra.mxu0 0
    %719 = vmatprep.subr.bf16.mxu0 0
    %720 = vmatpush1.bf16.msra.mxu0 0
    %721 = vmatprep.subr.bf16.mxu0 0
    %722 = vmatpush1.bf16.msra.mxu0 0
    %723 = vmatprep.mubr.bf16.mxu0 0
    %724 = vmatmul.mubr.bf16.gmra.mrb[0].mxu0 %v151
    %v725 = vpop.f32.mrb[0].mxu0
    %v726 = vadd.f32 %v518, %v725
    %v727 = vpop.f32.mrb[0].mxu0
    %v728 = vpop.f32.mrb[0].mxu0
    %v729 = vpop.f32.mrb[0].mxu0
    %730 = vdwg.mxu0
    %v731 = vadd.f32 %v427, %v685
    %v732 = vxor.u32 %v731, 2147483648
    %v733 = vmul.f32 %v732, 1.442695
    %v734 = vpow.pop %v733
    %v735 = vadd.f32 %v734, 1.0
    %v736 = vrcp.pop %v735
    %v737 = vmul.f32 1.0, %v736
    %v738 = vadd.f32 %v429, %v687
    %v739 = vxor.u32 %v738, 2147483648
    %v740 = vmul.f32 %v739, 1.442695
    %v741 = vpow.pop %v740
    %v742 = vadd.f32 %v741, 1.0
    %v743 = vrcp.pop %v742
    %v744 = vmul.f32 1.0, %v743
    %v745 = vmul.f32 %v737, %v726
    %v746 = vadd.f32 %v468, %v745
    %v747 = vtanh.pop %v746
    %v748 = vsub.f32 %v153, %v747
    %v749 = vmul.f32 %v744, %v748
    %v750 = vadd.f32 %v747, %v749
    %v751 = vpack.c.bf16 %v750, %v750
    %v752 = vld [vmem:[#allocation13] sm:$0xff]
    %v753 = vld [vmem:[#allocation13 + $0x8] sm:$0xff]
    %v754 = vld [vmem:[#allocation13 + $0x10] sm:$0xff]
    %v755 = vld [vmem:[#allocation13 + $0x18] sm:$0xff]
    %v756 = vld [vmem:[#allocation13 + $0x20] sm:$0xff]
    %v757 = vld [vmem:[#allocation13 + $0x28] sm:$0xff]
    %v758 = vld [vmem:[#allocation13 + $0x30] sm:$0xff]
    %v759 = vld [vmem:[#allocation13 + $0x38] sm:$0xff]
    %v760 = vld [vmem:[#allocation13 + $0x40] sm:$0xff]
    %v761 = vld [vmem:[#allocation13 + $0x48] sm:$0xff]
    %v762 = vld [vmem:[#allocation13 + $0x50] sm:$0xff]
    %v763 = vld [vmem:[#allocation13 + $0x58] sm:$0xff]
    %v764 = vld [vmem:[#allocation13 + $0x60] sm:$0xff]
    %v765 = vld [vmem:[#allocation13 + $0x68] sm:$0xff]
    %v766 = vld [vmem:[#allocation13 + $0x70] sm:$0xff]
    %v767 = vld [vmem:[#allocation13 + $0x78] sm:$0xff]
    %v768 = vld [vmem:[%s10] sm:$0x3]
    %v770 = vlaneseq
    %v771 = vshrl.u32 %v770, 7
    %v772 = vsub.s32 0, %v771
    %v773 = vrot.slane %v768, %v772
    %v774 = vlaneseq
    %v775 = vshrl.u32 %v774, 7
    %v776 = vsub.s32 1, %v775
    %v777 = vrot.slane %v768, %v776
    %v796 = vunpack.c.l.b16 %v752
    %v797 = vunpack.c.h.b16 %v752
    %v798 = vunpack.c.l.b16 %v753
    %v799 = vunpack.c.h.b16 %v753
    %v800 = vunpack.c.l.b16 %v754
    %v801 = vunpack.c.h.b16 %v754
    %v802 = vunpack.c.l.b16 %v755
    %v803 = vunpack.c.h.b16 %v755
    %v804 = vunpack.c.l.b16 %v756
    %v805 = vunpack.c.h.b16 %v756
    %v806 = vunpack.c.l.b16 %v757
    %v807 = vunpack.c.h.b16 %v757
    %v808 = vunpack.c.l.b16 %v758
    %v809 = vunpack.c.h.b16 %v758
    %v810 = vunpack.c.l.b16 %v759
    %v811 = vunpack.c.h.b16 %v759
    %v812 = vunpack.c.l.b16 %v760
    %v813 = vunpack.c.h.b16 %v760
    %v814 = vunpack.c.l.b16 %v761
    %v815 = vunpack.c.h.b16 %v761
    %v816 = vunpack.c.l.b16 %v762
    %v817 = vunpack.c.h.b16 %v762
    %v818 = vunpack.c.l.b16 %v763
    %v819 = vunpack.c.h.b16 %v763
    %v820 = vunpack.c.l.b16 %v764
    %v821 = vunpack.c.h.b16 %v764
    %v822 = vunpack.c.l.b16 %v765
    %v823 = vunpack.c.h.b16 %v765
    %v824 = vunpack.c.l.b16 %v766
    %v825 = vunpack.c.h.b16 %v766
    %v826 = vunpack.c.l.b16 %v767
    %v827 = vunpack.c.h.b16 %v767
    %v828 = vpack.c.b16 %v798, %v796
    %v829 = vpack.c.b16 %v799, %v797
    %v830 = vpack.c.b16 %v802, %v800
    %v831 = vpack.c.b16 %v803, %v801
    %v832 = vpack.c.b16 %v806, %v804
    %v833 = vpack.c.b16 %v807, %v805
    %v834 = vpack.c.b16 %v810, %v808
    %v835 = vpack.c.b16 %v811, %v809
    %v836 = vpack.c.b16 %v814, %v812
    %v837 = vpack.c.b16 %v815, %v813
    %v838 = vpack.c.b16 %v818, %v816
    %v839 = vpack.c.b16 %v819, %v817
    %v840 = vpack.c.b16 %v822, %v820
    %v841 = vpack.c.b16 %v823, %v821
    %v842 = vpack.c.b16 %v826, %v824
    %v843 = vpack.c.b16 %v827, %v825
    %860 = vmatprep.subr.bf16.mxu0 %v829
    %861 = vmatpush1.bf16.msra.mxu0 %v828
    %862 = vmatprep.subr.bf16.mxu0 %v831
    %863 = vmatpush1.bf16.msra.mxu0 %v830
    %864 = vmatprep.subr.bf16.mxu0 %v833
    %865 = vmatpush1.bf16.msra.mxu0 %v832
    %866 = vmatprep.subr.bf16.mxu0 %v835
    %867 = vmatpush1.bf16.msra.mxu0 %v834
    %868 = vmatprep.subr.bf16.mxu0 %v837
    %869 = vmatpush1.bf16.msra.mxu0 %v836
    %870 = vmatprep.subr.bf16.mxu0 %v839
    %871 = vmatpush1.bf16.msra.mxu0 %v838
    %872 = vmatprep.subr.bf16.mxu0 %v841
    %873 = vmatpush1.bf16.msra.mxu0 %v840
    %874 = vmatprep.subr.bf16.mxu0 %v843
    %875 = vmatpush1.bf16.msra.mxu0 %v842
    %876 = vmatprep.subr.bf16.mxu0 0
    %877 = vmatpush1.bf16.msra.mxu0 0
    %878 = vmatprep.subr.bf16.mxu0 0
    %879 = vmatpush1.bf16.msra.mxu0 0
    %880 = vmatprep.subr.bf16.mxu0 0
    %881 = vmatpush1.bf16.msra.mxu0 0
    %882 = vmatprep.subr.bf16.mxu0 0
    %883 = vmatpush1.bf16.msra.mxu0 0
    %884 = vmatprep.subr.bf16.mxu0 0
    %885 = vmatpush1.bf16.msra.mxu0 0
    %886 = vmatprep.subr.bf16.mxu0 0
    %887 = vmatpush1.bf16.msra.mxu0 0
    %888 = vmatprep.subr.bf16.mxu0 0
    %889 = vmatpush1.bf16.msra.mxu0 0
    %890 = vmatprep.subr.bf16.mxu0 0
    %891 = vmatpush1.bf16.msra.mxu0 0
    %892 = vmatprep.mubr.bf16.mxu0 0
    %893 = vmatmul.mubr.bf16.gmra.mrb[0].mxu0 %v751
    %v894 = vpop.f32.mrb[0].mxu0
    %v895 = vadd.f32 %v773, %v894
    %v896 = vpop.f32.mrb[0].mxu0
    %v897 = vadd.f32 %v777, %v896
    %v898 = vpop.f32.mrb[0].mxu0
    %v899 = vpop.f32.mrb[0].mxu0
    %900 = vdwg.mxu0
    %v901 = vld [vmem:[%s11] sm:$0xf]
    %vm902 = vcmask 64512
    %v904 = vsel %vm902, %v152, 0
    %vm906 = vcmask 1043456
    %v908 = vsel %vm906, %v901, 0
    %910 = vmatprep.subr.bf16.mxu0 0
    %911 = vmatpush1.bf16.msra.mxu0 %v908
    %912 = vmatprep.subr.bf16.mxu0 0
    %913 = vmatpush1.bf16.msra.mxu0 0
    %914 = vmatprep.subr.bf16.mxu0 0
    %915 = vmatpush1.bf16.msra.mxu0 0
    %916 = vmatprep.subr.bf16.mxu0 0
    %917 = vmatpush1.bf16.msra.mxu0 0
    %918 = vmatprep.subr.bf16.mxu0 0
    %919 = vmatpush1.bf16.msra.mxu0 0
    %920 = vmatprep.subr.bf16.mxu0 0
    %921 = vmatpush1.bf16.msra.mxu0 0
    %922 = vmatprep.subr.bf16.mxu0 0
    %923 = vmatpush1.bf16.msra.mxu0 0
    %924 = vmatprep.subr.bf16.mxu0 0
    %925 = vmatpush1.bf16.msra.mxu0 0
    %926 = vmatprep.subr.bf16.mxu0 0
    %927 = vmatpush1.bf16.msra.mxu0 0
    %928 = vmatprep.subr.bf16.mxu0 0
    %929 = vmatpush1.bf16.msra.mxu0 0
    %930 = vmatprep.subr.bf16.mxu0 0
    %931 = vmatpush1.bf16.msra.mxu0 0
    %932 = vmatprep.subr.bf16.mxu0 0
    %933 = vmatpush1.bf16.msra.mxu0 0
    %934 = vmatprep.subr.bf16.mxu0 0
    %935 = vmatpush1.bf16.msra.mxu0 0
    %936 = vmatprep.subr.bf16.mxu0 0
    %937 = vmatpush1.bf16.msra.mxu0 0
    %938 = vmatprep.subr.bf16.mxu0 0
    %939 = vmatpush1.bf16.msra.mxu0 0
    %940 = vmatprep.subr.bf16.mxu0 0
    %941 = vmatpush1.bf16.msra.mxu0 0
    %942 = vmatprep.mubr.bf16.mxu0 0
    %943 = vmatmul.mubr.bf16.gmra.mrb[0].mxu0 %v904
    %v944 = vpop.f32.mrb[0].mxu0
    %v945 = vadd.f32 0.0, %v944
    %v946 = vpop.f32.mrb[0].mxu0
    %v947 = vpop.f32.mrb[0].mxu0
    %v948 = vpop.f32.mrb[0].mxu0
    %949 = vdwg.mxu0
    %v950 = vadd.f32 %v895, %v945
    %v951 = vmax.f32 %v950, 0.0
    %v952 = vpack.c.bf16 %v951, %v951
    %v953 = vld [vmem:[#allocation14] sm:$0xf]
    %v954 = vld [vmem:[#allocation14 + $0x4] sm:$0xf]
    %v955 = vld [vmem:[#allocation14 + $0x8] sm:$0xf]
    %v956 = vld [vmem:[#allocation14 + $0xc] sm:$0xf]
    %v957 = vld [vmem:[#allocation14 + $0x10] sm:$0xf]
    %v958 = vld [vmem:[#allocation14 + $0x14] sm:$0xf]
    %v959 = vld [vmem:[#allocation14 + $0x18] sm:$0xf]
    %v960 = vld [vmem:[#allocation14 + $0x1c] sm:$0xf]
    %v961 = vld [vmem:[#allocation14 + $0x20] sm:$0xf]
    %v962 = vld [vmem:[#allocation14 + $0x24] sm:$0xf]
    %v963 = vld [vmem:[#allocation14 + $0x28] sm:$0xf]
    %v964 = vld [vmem:[#allocation14 + $0x2c] sm:$0xf]
    %v965 = vld [vmem:[#allocation14 + $0x30] sm:$0xf]
    %v966 = vld [vmem:[#allocation14 + $0x34] sm:$0xf]
    %v967 = vld [vmem:[#allocation14 + $0x38] sm:$0xf]
    %v968 = vld [vmem:[#allocation14 + $0x3c] sm:$0xf]
    %v985 = vunpack.c.l.b16 %v953
    %v986 = vunpack.c.l.b16 %v954
    %v987 = vunpack.c.l.b16 %v955
    %v988 = vunpack.c.l.b16 %v956
    %v989 = vunpack.c.l.b16 %v957
    %v990 = vunpack.c.l.b16 %v958
    %v991 = vunpack.c.l.b16 %v959
    %v992 = vunpack.c.l.b16 %v960
    %v993 = vunpack.c.l.b16 %v961
    %v994 = vunpack.c.l.b16 %v962
    %v995 = vunpack.c.l.b16 %v963
    %v996 = vunpack.c.l.b16 %v964
    %v997 = vunpack.c.l.b16 %v965
    %v998 = vunpack.c.l.b16 %v966
    %v999 = vunpack.c.l.b16 %v967
    %v1000 = vunpack.c.l.b16 %v968
    %v1001 = vpack.c.b16 %v986, %v985
    %v1002 = vpack.c.b16 %v988, %v987
    %v1003 = vpack.c.b16 %v990, %v989
    %v1004 = vpack.c.b16 %v992, %v991
    %v1005 = vpack.c.b16 %v994, %v993
    %v1006 = vpack.c.b16 %v996, %v995
    %v1007 = vpack.c.b16 %v998, %v997
    %v1008 = vpack.c.b16 %v1000, %v999
    %1017 = vmatprep.subr.bf16.mxu0 0
    %1018 = vmatpush1.bf16.msra.mxu0 %v1001
    %1019 = vmatprep.subr.bf16.mxu0 0
    %1020 = vmatpush1.bf16.msra.mxu0 %v1002
    %1021 = vmatprep.subr.bf16.mxu0 0
    %1022 = vmatpush1.bf16.msra.mxu0 %v1003
    %1023 = vmatprep.subr.bf16.mxu0 0
    %1024 = vmatpush1.bf16.msra.mxu0 %v1004
    %1025 = vmatprep.subr.bf16.mxu0 0
    %1026 = vmatpush1.bf16.msra.mxu0 %v1005
    %1027 = vmatprep.subr.bf16.mxu0 0
    %1028 = vmatpush1.bf16.msra.mxu0 %v1006
    %1029 = vmatprep.subr.bf16.mxu0 0
    %1030 = vmatpush1.bf16.msra.mxu0 %v1007
    %1031 = vmatprep.subr.bf16.mxu0 0
    %1032 = vmatpush1.bf16.msra.mxu0 %v1008
    %1033 = vmatprep.subr.bf16.mxu0 0
    %1034 = vmatpush1.bf16.msra.mxu0 0
    %1035 = vmatprep.subr.bf16.mxu0 0
    %1036 = vmatpush1.bf16.msra.mxu0 0
    %1037 = vmatprep.subr.bf16.mxu0 0
    %1038 = vmatpush1.bf16.msra.mxu0 0
    %1039 = vmatprep.subr.bf16.mxu0 0
    %1040 = vmatpush1.bf16.msra.mxu0 0
    %1041 = vmatprep.subr.bf16.mxu0 0
    %1042 = vmatpush1.bf16.msra.mxu0 0
    %1043 = vmatprep.subr.bf16.mxu0 0
    %1044 = vmatpush1.bf16.msra.mxu0 0
    %1045 = vmatprep.subr.bf16.mxu0 0
    %1046 = vmatpush1.bf16.msra.mxu0 0
    %1047 = vmatprep.subr.bf16.mxu0 0
    %1048 = vmatpush1.bf16.msra.mxu0 0
    %1049 = vmatprep.mubr.bf16.mxu0 0
    %1050 = vmatmul.mubr.bf16.gmra.mrb[0].mxu0 %v952
    %v1051 = vpop.f32.mrb[0].mxu0
    %v1052 = vadd.f32 0.0, %v1051
    %v1053 = vpop.f32.mrb[0].mxu0
    %v1054 = vpop.f32.mrb[0].mxu0
    %v1055 = vpop.f32.mrb[0].mxu0
    %1056 = vdwg.mxu0
    %v1057 = vadd.f32 %v897, %v1052
    %1058 = vst [vmem:[#allocation16] sm:$0xff] %v1057
    %1059 = vst [vmem:[#allocation17] sm:$0xf] %v751
    // Predicated region
    $region86: #{tpu_custom_call.1} parent=1 // pred_check
      _
    $region87: #{tpu_custom_call.1} parent=1 // pred_check_branch
      %1061 = sbr.rel (0) target = $region89
    $region88: #{tpu_custom_call.1} parent=1 // pred_region
      %s1063 = ssub.s32 128, 128
      %1064 = vsyncadd [#allocation4], %s1063
      %s1066 = sshll.u32 [#allocation16], 4
      %s1067 = int_to_ptr.vmem [resolvable:$true] %s1066
      %1069 = dma.vmem_to_hbm [thread:$0]  %s1067, 128, %s13, [#allocation4]
    $region89: #{tpu_custom_call.1} parent=1 // pred_fallthru
      _
    // Predicated region
    $region90: #{tpu_custom_call.1} parent=1 // pred_check
      _
    $region91: #{tpu_custom_call.1} parent=1 // pred_check_branch
      %1071 = sbr.rel (0) target = $region93
    $region92: #{tpu_custom_call.1} parent=1 // pred_region
      %s1073 = ssub.s32 64, 64
      %1074 = vsyncadd [#allocation18], %s1073
      %s1076 = sshll.u32 [#allocation17], 4
      %s1077 = int_to_ptr.vmem [resolvable:$true] %s1076
      %1079 = dma.vmem_to_hbm [thread:$0]  %s1077, 64, %s14, [#allocation18]
    $region93: #{tpu_custom_call.1} parent=1 // pred_fallthru
      _
    // Predicated region
    $region94: #{tpu_custom_call.1} parent=1 // pred_check
      _
    $region95: #{tpu_custom_call.1} parent=1 // pred_check_branch
      %1081 = sbr.rel (0) target = $region97
    $region96: #{tpu_custom_call.1} parent=1 // pred_region
      %1082 = dma.done [#allocation4], 128
    $region97: #{tpu_custom_call.1} parent=1 // pred_fallthru
      _
    // Predicated region
    $region98: #{tpu_custom_call.1} parent=1 // pred_check
      _
    $region99: #{tpu_custom_call.1} parent=1 // pred_check_branch
      %1084 = sbr.rel (0) target = $region101
    $region100: #{tpu_custom_call.1} parent=1 // pred_region
      %1085 = dma.done [#allocation18], 64
    $region101: #{tpu_custom_call.1} parent=1 // pred_fallthru
      _
    %1086 = vsyncpa [#allocation3], 1
    %1087 = vsyncpa [#allocation6], 1
    %1088 = vsyncpa [#allocation9], 1
    %1089 = vsyncpa [#allocation12], 1
    %1090 = vsyncpa [#allocation15], 1
    %1091 = vsyncpa [#allocation4], 1
    %1092 = vsyncpa [#allocation18], 1

// kernel: tpu_custom_call.1
$region0: #{tpu_custom_call.1}
  #allocation0 [shape = 'u32[]', space=smem, size = 0x4, offset = 0x4, fixed_abs, tag = 'smem constant byte address 0x4 - core index']
  #allocation1 [shape = 'u32[144,128]{1,0:T(1,128)}', space=vmem, size = 0x12000, scoped, tag = 'internal scratch']
  %s0 = inlined_call_operand.hbm [shape: bf16[8,16], index: 0, kind: input, shape index: {}]
  %s1 = inlined_call_operand.hbm [shape: bf16[8,128], index: 1, kind: input, shape index: {}]
  %s2 = inlined_call_operand.hbm [shape: bf16[8,8], index: 2, kind: input, shape index: {}]
  %s3 = inlined_call_operand.vmem [shape: bf16[16,128], index: 3, kind: input, shape index: {}]
  %s4 = inlined_call_operand.hbm [shape: f32[1,128], index: 4, kind: input, shape index: {}]
  %s5 = inlined_call_operand.hbm [shape: bf16[128,384], index: 5, kind: input, shape index: {}]
  %s6 = inlined_call_operand.vmem [shape: f32[1,384], index: 6, kind: input, shape index: {}]
  %s7 = inlined_call_operand.hbm [shape: bf16[128,384], index: 7, kind: input, shape index: {}]
  %s8 = inlined_call_operand.vmem [shape: f32[1,384], index: 8, kind: input, shape index: {}]
  %s9 = inlined_call_operand.hbm [shape: bf16[128,256], index: 9, kind: input, shape index: {}]
  %s10 = inlined_call_operand.vmem [shape: f32[1,256], index: 10, kind: input, shape index: {}]
  %s11 = inlined_call_operand.vmem [shape: bf16[8,128], index: 11, kind: input, shape index: {}]
  %s12 = inlined_call_operand.hbm [shape: bf16[128,128], index: 12, kind: input, shape index: {}]
  %s13 = inlined_call_operand.hbm [shape: f32[8,128], index: 13, kind: output, shape index: {0}]
  %s14 = inlined_call_operand.hbm [shape: bf16[8,128], index: 14, kind: output, shape index: {1}]
  %15 = xla_tuple %s13, %s14
  %s16 = sld [smem:[#allocation0]]
  $region102: #{tpu_custom_call.1} parent=0
    _
  %s18 = ssub.s32 1, %s16
  %s19 = scalar_select 0, %s18, %s16
  $region1: #{tpu_custom_call.1} parent=0
    #allocation2 [shape = 'u8[2048]{0}', space=vmem, size = 0x800, scoped, tag = 'input window, operand 0, single buffered']
    #allocation3 [shape = 's32[1]{0}', space=sflag, size = 0x4, scoped, tag = 'scoped memory for tpu_custom_call.1']
    #allocation4 [shape = 's32[1]{0}', space=sflag, size = 0x4, scoped, tag = 'scoped memory for tpu_custom_call.1']
    #allocation5 [shape = 'u8[2048]{0}', space=vmem, size = 0x800, scoped, tag = 'input window, operand 1, single buffered']
    #allocation6 [shape = 's32[1]{0}', space=sflag, size = 0x4, scoped, tag = 'scoped memory for tpu_custom_call.1']
    #allocation7 [shape = 'u8[2048]{0}', space=vmem, size = 0x800, scoped, tag = 'input window, operand 2, single buffered']
    #allocation8 [shape = 'u8[512]{0}', space=vmem, size = 0x400, scoped, tag = 'input window, operand 4, single buffered']
    #allocation9 [shape = 's32[1]{0}', space=sflag, size = 0x4, scoped, tag = 'scoped memory for tpu_custom_call.1']
    #allocation10 [shape = 'u8[98304]{0}', space=vmem, size = 0x18000, scoped, tag = 'input window, operand 5, single buffered']
    #allocation11 [shape = 'u8[98304]{0}', space=vmem, size = 0x18000, scoped, tag = 'input window, operand 7, single buffered']
    #allocation12 [shape = 's32[1]{0}', space=sflag, size = 0x4, scoped, tag = 'scoped memory for tpu_custom_call.1']
    #allocation13 [shape = 'u8[65536]{0}', space=vmem, size = 0x10000, scoped, tag = 'input window, operand 9, single buffered']
    #allocation14 [shape = 'u8[32768]{0}', space=vmem, size = 0x8000, scoped, tag = 'input window, operand 12, single buffered']
    #allocation15 [shape = 's32[1]{0}', space=sflag, size = 0x4, scoped, tag = 'scoped memory for tpu_custom_call.1']
    #allocation16 [shape = 'u8[4096]{0}', space=vmem, size = 0x1000, scoped, tag = 'output window, operand 0, single buffered']
    #allocation17 [shape = 'u8[2048]{0}', space=vmem, size = 0x800, scoped, tag = 'output window, operand 1, single buffered']
    #allocation18 [shape = 's32[1]{0}', space=sflag, size = 0x4, scoped, tag = 'scoped memory for tpu_custom_call.1']
    %20 = vsyncpa [#allocation3], 0
    %21 = vsyncpa [#allocation6], 0
    %22 = vsyncpa [#allocation9], 0
    %23 = vsyncpa [#allocation12], 0
    %24 = vsyncpa [#allocation15], 0
    %25 = vsyncpa [#allocation4], 0
    %26 = vsyncpa [#allocation18], 0
    // Predicated region
    $region2: #{tpu_custom_call.1} parent=1 // pred_check
      _
    $region3: #{tpu_custom_call.1} parent=1 // pred_check_branch
      %28 = sbr.rel (0) target = $region5
    $region4: #{tpu_custom_call.1} parent=1 // pred_region
      %s30 = ssub.s32 64, 64
      %31 = vsyncadd [#allocation3], %s30
      %s33 = sshll.u32 [#allocation2], 4
      %s34 = int_to_ptr.vmem [resolvable:$true] %s33
      %36 = dma.hbm_to_vmem [thread:$0]  %s0, 64, %s34, [#allocation3]
    $region5: #{tpu_custom_call.1} parent=1 // pred_fallthru
      _
    // Predicated region
    $region6: #{tpu_custom_call.1} parent=1 // pred_check
      _
    $region7: #{tpu_custom_call.1} parent=1 // pred_check_branch
      %38 = sbr.rel (0) target = $region9
    $region8: #{tpu_custom_call.1} parent=1 // pred_region
      %s40 = ssub.s32 64, 64
      %41 = vsyncadd [#allocation6], %s40
      %s43 = sshll.u32 [#allocation5], 4
      %s44 = int_to_ptr.vmem [resolvable:$true] %s43
      %46 = dma.hbm_to_vmem [thread:$0]  %s1, 64, %s44, [#allocation6]
    $region9: #{tpu_custom_call.1} parent=1 // pred_fallthru
      _
    // Predicated region
    $region10: #{tpu_custom_call.1} parent=1 // pred_check
      _
    $region11: #{tpu_custom_call.1} parent=1 // pred_check_branch
      %48 = sbr.rel (0) target = $region13
    $region12: #{tpu_custom_call.1} parent=1 // pred_region
      %s50 = ssub.s32 64, 64
      %51 = vsyncadd [#allocation6], %s50
      %s53 = sshll.u32 [#allocation7], 4
      %s54 = int_to_ptr.vmem [resolvable:$true] %s53
      %56 = dma.hbm_to_vmem [thread:$0]  %s2, 64, %s54, [#allocation6]
    $region13: #{tpu_custom_call.1} parent=1 // pred_fallthru
      _
    // Predicated region
    $region14: #{tpu_custom_call.1} parent=1 // pred_check
      _
    $region15: #{tpu_custom_call.1} parent=1 // pred_check_branch
      %58 = sbr.rel (0) target = $region17
    $region16: #{tpu_custom_call.1} parent=1 // pred_region
      _
    $region17: #{tpu_custom_call.1} parent=1 // pred_fallthru
      _
    // Predicated region
    $region18: #{tpu_custom_call.1} parent=1 // pred_check
      _
    $region19: #{tpu_custom_call.1} parent=1 // pred_check_branch
      %60 = sbr.rel (0) target = $region21
    $region20: #{tpu_custom_call.1} parent=1 // pred_region
      %s62 = ssub.s32 16, 16
      %63 = vsyncadd [#allocation9], %s62
      %s65 = sshll.u32 [#allocation8], 4
      %s66 = int_to_ptr.vmem [resolvable:$true] %s65
      %68 = dma.hbm_to_vmem [thread:$0]  %s4, 16, %s66, [#allocation9]
    $region21: #{tpu_custom_call.1} parent=1 // pred_fallthru
      _
    // Predicated region
    $region22: #{tpu_custom_call.1} parent=1 // pred_check
      _
    $region23: #{tpu_custom_call.1} parent=1 // pred_check_branch
      %70 = sbr.rel (0) target = $region25
    $region24: #{tpu_custom_call.1} parent=1 // pred_region
      %s72 = ssub.s32 3072, 3072
      %73 = vsyncadd [#allocation9], %s72
      %s74 = sshll.u32 [#allocation10], 4
      %s75 = int_to_ptr.vmem [resolvable:$true] %s74
      %80 = dma.hbm_to_vmem [thread:$0]  %s5, 3072, %s75, [#allocation9], 192, 192, 12
    $region25: #{tpu_custom_call.1} parent=1 // pred_fallthru
      _
    // Predicated region
    $region26: #{tpu_custom_call.1} parent=1 // pred_check
      _
    $region27: #{tpu_custom_call.1} parent=1 // pred_check_branch
      %82 = sbr.rel (0) target = $region29
    $region28: #{tpu_custom_call.1} parent=1 // pred_region
      _
    $region29: #{tpu_custom_call.1} parent=1 // pred_fallthru
      _
    // Predicated region
    $region30: #{tpu_custom_call.1} parent=1 // pred_check
      _
    $region31: #{tpu_custom_call.1} parent=1 // pred_check_branch
      %84 = sbr.rel (0) target = $region33
    $region32: #{tpu_custom_call.1} parent=1 // pred_region
      %s86 = ssub.s32 3072, 3072
      %87 = vsyncadd [#allocation12], %s86
      %s88 = sshll.u32 [#allocation11], 4
      %s89 = int_to_ptr.vmem [resolvable:$true] %s88
      %94 = dma.hbm_to_vmem [thread:$0]  %s7, 3072, %s89, [#allocation12], 192, 192, 12
    $region33: #{tpu_custom_call.1} parent=1 // pred_fallthru
      _
    // Predicated region
    $region34: #{tpu_custom_call.1} parent=1 // pred_check
      _
    $region35: #{tpu_custom_call.1} parent=1 // pred_check_branch
      %96 = sbr.rel (0) target = $region37
    $region36: #{tpu_custom_call.1} parent=1 // pred_region
      _
    $region37: #{tpu_custom_call.1} parent=1 // pred_fallthru
      _
    // Predicated region
    $region38: #{tpu_custom_call.1} parent=1 // pred_check
      _
    $region39: #{tpu_custom_call.1} parent=1 // pred_check_branch
      %98 = sbr.rel (0) target = $region41
    $region40: #{tpu_custom_call.1} parent=1 // pred_region
      %s100 = ssub.s32 2048, 2048
      %101 = vsyncadd [#allocation12], %s100
      %s102 = sshll.u32 [#allocation13], 4
      %s103 = int_to_ptr.vmem [resolvable:$true] %s102
      %108 = dma.hbm_to_vmem [thread:$0]  %s9, 2048, %s103, [#allocation12], 128, 128, 8
    $region41: #{tpu_custom_call.1} parent=1 // pred_fallthru
      _
    // Predicated region
    $region42: #{tpu_custom_call.1} parent=1 // pred_check
      _
    $region43: #{tpu_custom_call.1} parent=1 // pred_check_branch
      %110 = sbr.rel (0) target = $region45
    $region44: #{tpu_custom_call.1} parent=1 // pred_region
      _
    $region45: #{tpu_custom_call.1} parent=1 // pred_fallthru
      _
    // Predicated region
    $region46: #{tpu_custom_call.1} parent=1 // pred_check
      _
    $region47: #{tpu_custom_call.1} parent=1 // pred_check_branch
      %112 = sbr.rel (0) target = $region49
    $region48: #{tpu_custom_call.1} parent=1 // pred_region
      _
    $region49: #{tpu_custom_call.1} parent=1 // pred_fallthru
      _
    // Predicated region
    $region50: #{tpu_custom_call.1} parent=1 // pred_check
      _
    $region51: #{tpu_custom_call.1} parent=1 // pred_check_branch
      %114 = sbr.rel (0) target = $region53
    $region52: #{tpu_custom_call.1} parent=1 // pred_region
      %s116 = ssub.s32 1024, 1024
      %117 = vsyncadd [#allocation15], %s116
      %s118 = sshll.u32 [#allocation14], 4
      %s119 = int_to_ptr.vmem [resolvable:$true] %s118
      %124 = dma.hbm_to_vmem [thread:$0]  %s12, 1024, %s119, [#allocation15], 64, 64, 4
    $region53: #{tpu_custom_call.1} parent=1 // pred_fallthru
      _
    // Predicated region
    $region54: #{tpu_custom_call.1} parent=1 // pred_check
      _
    $region55: #{tpu_custom_call.1} parent=1 // pred_check_branch
      %126 = sbr.rel (0) target = $region57
    $region56: #{tpu_custom_call.1} parent=1 // pred_region
      %127 = dma.done [#allocation3], 64
    $region57: #{tpu_custom_call.1} parent=1 // pred_fallthru
      _
    // Predicated region
    $region58: #{tpu_custom_call.1} parent=1 // pred_check
      _
    $region59: #{tpu_custom_call.1} parent=1 // pred_check_branch
      %129 = sbr.rel (0) target = $region61
    $region60: #{tpu_custom_call.1} parent=1 // pred_region
      %130 = dma.done [#allocation6], 64
    $region61: #{tpu_custom_call.1} parent=1 // pred_fallthru
      _
    // Predicated region
    $region62: #{tpu_custom_call.1} parent=1 // pred_check
      _
    $region63: #{tpu_custom_call.1} parent=1 // pred_check_branch
      %132 = sbr.rel (0) target = $region65
    $region64: #{tpu_custom_call.1} parent=1 // pred_region
      %133 = dma.done [#allocation6], 64
    $region65: #{tpu_custom_call.1} parent=1 // pred_fallthru
      _
    // Predicated region
    $region66: #{tpu_custom_call.1} parent=1 // pred_check
      _
    $region67: #{tpu_custom_call.1} parent=1 // pred_check_branch
      %135 = sbr.rel (0) target = $region69
    $region68: #{tpu_custom_call.1} parent=1 // pred_region
      %136 = dma.done [#allocation9], 16
    $region69: #{tpu_custom_call.1} parent=1 // pred_fallthru
      _
    // Predicated region
    $region70: #{tpu_custom_call.1} parent=1 // pred_check
      _
    $region71: #{tpu_custom_call.1} parent=1 // pred_check_branch
      %138 = sbr.rel (0) target = $region73
    $region72: #{tpu_custom_call.1} parent=1 // pred_region
      %139 = dma.done [#allocation9], 3072
    $region73: #{tpu_custom_call.1} parent=1 // pred_fallthru
      _
    // Predicated region
    $region74: #{tpu_custom_call.1} parent=1 // pred_check
      _
    $region75: #{tpu_custom_call.1} parent=1 // pred_check_branch
      %141 = sbr.rel (0) target = $region77
    $region76: #{tpu_custom_call.1} parent=1 // pred_region
      %142 = dma.done [#allocation12], 3072
    $region77: #{tpu_custom_call.1} parent=1 // pred_fallthru
      _
    // Predicated region
    $region78: #{tpu_custom_call.1} parent=1 // pred_check
      _
    $region79: #{tpu_custom_call.1} parent=1 // pred_check_branch
      %144 = sbr.rel (0) target = $region81
    $region80: #{tpu_custom_call.1} parent=1 // pred_region
      %145 = dma.done [#allocation12], 2048
    $region81: #{tpu_custom_call.1} parent=1 // pred_fallthru
      _
    // Predicated region
    $region82: #{tpu_custom_call.1} parent=1 // pred_check
      _
    $region83: #{tpu_custom_call.1} parent=1 // pred_check_branch
      %147 = sbr.rel (0) target = $region85
    $region84: #{tpu_custom_call.1} parent=1 // pred_region
      %148 = dma.done [#allocation15], 1024
    $region85: #{tpu_custom_call.1} parent=1 // pred_fallthru
      _
    %v150 = vld [vmem:[#allocation2] sm:$0xf]
    %v151 = vld [vmem:[#allocation5] sm:$0xf]
    %v152 = vld [vmem:[#allocation7] sm:$0xf]
    %v153 = vunpack.c.l.bf16 %v151
    %v154 = vld [vmem:[%s3] sm:$0xf]
    %v155 = vld [vmem:[%s3 + $0x4] sm:$0xf]
    %v156 = vld [vmem:[#allocation8] sm:$0x1]
    %v158 = vlaneseq
    %v159 = vshrl.u32 %v158, 7
    %v160 = vsub.s32 0, %v159
    %v161 = vrot.slane %v156, %v160
    %v165 = vunpack.c.l.b16 %v154
    %v166 = vunpack.c.l.b16 %v155
    %v167 = vpack.c.b16 %v166, %v165
    %vm169 = vcmask 130048
    %v171 = vsel %vm169, %v150, 0
    %173 = vmatprep.subr.bf16.mxu0 0
    %174 = vmatpush1.bf16.msra.mxu0 %v167
    %175 = vmatprep.subr.bf16.mxu0 0
    %176 = vmatpush1.bf16.msra.mxu0 0
    %177 = vmatprep.subr.bf16.mxu0 0
    %178 = vmatpush1.bf16.msra.mxu0 0
    %179 = vmatprep.subr.bf16.mxu0 0
    %180 = vmatpush1.bf16.msra.mxu0 0
    %181 = vmatprep.subr.bf16.mxu0 0
    %182 = vmatpush1.bf16.msra.mxu0 0
    %183 = vmatprep.subr.bf16.mxu0 0
    %184 = vmatpush1.bf16.msra.mxu0 0
    %185 = vmatprep.subr.bf16.mxu0 0
    %186 = vmatpush1.bf16.msra.mxu0 0
    %187 = vmatprep.subr.bf16.mxu0 0
    %188 = vmatpush1.bf16.msra.mxu0 0
    %189 = vmatprep.subr.bf16.mxu0 0
    %190 = vmatpush1.bf16.msra.mxu0 0
    %191 = vmatprep.subr.bf16.mxu0 0
    %192 = vmatpush1.bf16.msra.mxu0 0
    %193 = vmatprep.subr.bf16.mxu0 0
    %194 = vmatpush1.bf16.msra.mxu0 0
    %195 = vmatprep.subr.bf16.mxu0 0
    %196 = vmatpush1.bf16.msra.mxu0 0
    %197 = vmatprep.subr.bf16.mxu0 0
    %198 = vmatpush1.bf16.msra.mxu0 0
    %199 = vmatprep.subr.bf16.mxu0 0
    %200 = vmatpush1.bf16.msra.mxu0 0
    %201 = vmatprep.subr.bf16.mxu0 0
    %202 = vmatpush1.bf16.msra.mxu0 0
    %203 = vmatprep.subr.bf16.mxu0 0
    %204 = vmatpush1.bf16.msra.mxu0 0
    %205 = vmatprep.mubr.bf16.mxu0 0
    %206 = vmatmul.mubr.bf16.gmra.mrb[0].mxu0 %v171
    %v207 = vpop.f32.mrb[0].mxu0
    %v208 = vadd.f32 %v161, %v207
    %v209 = vpop.f32.mrb[0].mxu0
    %v210 = vpop.f32.mrb[0].mxu0
    %v211 = vpop.f32.mrb[0].mxu0
    %212 = vdwg.mxu0
    %v213 = vmax.f32 %v208, 0.0
    %v214 = vpack.c.bf16 %v213, %v213
    %v215 = vld [vmem:[#allocation10] sm:$0xff]
    %v216 = vld [vmem:[#allocation10 + $0x8] sm:$0xf]
    %v217 = vld [vmem:[#allocation10 + $0xc] sm:$0xff]
    %v218 = vld [vmem:[#allocation10 + $0x14] sm:$0xf]
    %v219 = vld [vmem:[#allocation10 + $0x18] sm:$0xff]
    %v220 = vld [vmem:[#allocation10 + $0x20] sm:$0xf]
    %v221 = vld [vmem:[#allocation10 + $0x24] sm:$0xff]
    %v222 = vld [vmem:[#allocation10 + $0x2c] sm:$0xf]
    %v223 = vld [vmem:[#allocation10 + $0x30] sm:$0xff]
    %v224 = vld [vmem:[#allocation10 + $0x38] sm:$0xf]
    %v225 = vld [vmem:[#allocation10 + $0x3c] sm:$0xff]
    %v226 = vld [vmem:[#allocation10 + $0x44] sm:$0xf]
    %v227 = vld [vmem:[#allocation10 + $0x48] sm:$0xff]
    %v228 = vld [vmem:[#allocation10 + $0x50] sm:$0xf]
    %v229 = vld [vmem:[#allocation10 + $0x54] sm:$0xff]
    %v230 = vld [vmem:[#allocation10 + $0x5c] sm:$0xf]
    %v231 = vld [vmem:[#allocation10 + $0x60] sm:$0xff]
    %v232 = vld [vmem:[#allocation10 + $0x68] sm:$0xf]
    %v233 = vld [vmem:[#allocation10 + $0x6c] sm:$0xff]
    %v234 = vld [vmem:[#allocation10 + $0x74] sm:$0xf]
    %v235 = vld [vmem:[#allocation10 + $0x78] sm:$0xff]
    %v236 = vld [vmem:[#allocation10 + $0x80] sm:$0xf]
    %v237 = vld [vmem:[#allocation10 + $0x84] sm:$0xff]
    %v238 = vld [vmem:[#allocation10 + $0x8c] sm:$0xf]
    %v239 = vld [vmem:[#allocation10 + $0x90] sm:$0xff]
    %v240 = vld [vmem:[#allocation10 + $0x98] sm:$0xf]
    %v241 = vld [vmem:[#allocation10 + $0x9c] sm:$0xff]
    %v242 = vld [vmem:[#allocation10 + $0xa4] sm:$0xf]
    %v243 = vld [vmem:[#allocation10 + $0xa8] sm:$0xff]
    %v244 = vld [vmem:[#allocation10 + $0xb0] sm:$0xf]
    %v245 = vld [vmem:[#allocation10 + $0xb4] sm:$0xff]
    %v246 = vld [vmem:[#allocation10 + $0xbc] sm:$0xf]
    %v247 = vld [vmem:[%s6] sm:$0x7]
    %v249 = vlaneseq
    %v250 = vshrl.u32 %v249, 7
    %v251 = vsub.s32 0, %v250
    %v252 = vrot.slane %v247, %v251
    %v253 = vlaneseq
    %v254 = vshrl.u32 %v253, 7
    %v255 = vsub.s32 1, %v254
    %v256 = vrot.slane %v247, %v255
    %v257 = vlaneseq
    %v258 = vshrl.u32 %v257, 7
    %v259 = vsub.s32 2, %v258
    %v260 = vrot.slane %v247, %v259
    %v296 = vunpack.c.l.b16 %v215
    %v297 = vunpack.c.h.b16 %v215
    %v298 = vunpack.c.l.b16 %v216
    %v299 = vunpack.c.l.b16 %v217
    %v300 = vunpack.c.h.b16 %v217
    %v301 = vunpack.c.l.b16 %v218
    %v302 = vunpack.c.l.b16 %v219
    %v303 = vunpack.c.h.b16 %v219
    %v304 = vunpack.c.l.b16 %v220
    %v305 = vunpack.c.l.b16 %v221
    %v306 = vunpack.c.h.b16 %v221
    %v307 = vunpack.c.l.b16 %v222
    %v308 = vunpack.c.l.b16 %v223
    %v309 = vunpack.c.h.b16 %v223
    %v310 = vunpack.c.l.b16 %v224
    %v311 = vunpack.c.l.b16 %v225
    %v312 = vunpack.c.h.b16 %v225
    %v313 = vunpack.c.l.b16 %v226
    %v314 = vunpack.c.l.b16 %v227
    %v315 = vunpack.c.h.b16 %v227
    %v316 = vunpack.c.l.b16 %v228
    %v317 = vunpack.c.l.b16 %v229
    %v318 = vunpack.c.h.b16 %v229
    %v319 = vunpack.c.l.b16 %v230
    %v320 = vunpack.c.l.b16 %v231
    %v321 = vunpack.c.h.b16 %v231
    %v322 = vunpack.c.l.b16 %v232
    %v323 = vunpack.c.l.b16 %v233
    %v324 = vunpack.c.h.b16 %v233
    %v325 = vunpack.c.l.b16 %v234
    %v326 = vunpack.c.l.b16 %v235
    %v327 = vunpack.c.h.b16 %v235
    %v328 = vunpack.c.l.b16 %v236
    %v329 = vunpack.c.l.b16 %v237
    %v330 = vunpack.c.h.b16 %v237
    %v331 = vunpack.c.l.b16 %v238
    %v332 = vunpack.c.l.b16 %v239
    %v333 = vunpack.c.h.b16 %v239
    %v334 = vunpack.c.l.b16 %v240
    %v335 = vunpack.c.l.b16 %v241
    %v336 = vunpack.c.h.b16 %v241
    %v337 = vunpack.c.l.b16 %v242
    %v338 = vunpack.c.l.b16 %v243
    %v339 = vunpack.c.h.b16 %v243
    %v340 = vunpack.c.l.b16 %v244
    %v341 = vunpack.c.l.b16 %v245
    %v342 = vunpack.c.h.b16 %v245
    %v343 = vunpack.c.l.b16 %v246
    %v344 = vpack.c.b16 %v299, %v296
    %v345 = vpack.c.b16 %v300, %v297
    %v346 = vpack.c.b16 %v301, %v298
    %v347 = vpack.c.b16 %v305, %v302
    %v348 = vpack.c.b16 %v306, %v303
    %v349 = vpack.c.b16 %v307, %v304
    %v350 = vpack.c.b16 %v311, %v308
    %v351 = vpack.c.b16 %v312, %v309
    %v352 = vpack.c.b16 %v313, %v310
    %v353 = vpack.c.b16 %v317, %v314
    %v354 = vpack.c.b16 %v318, %v315
    %v355 = vpack.c.b16 %v319, %v316
    %v356 = vpack.c.b16 %v323, %v320
    %v357 = vpack.c.b16 %v324, %v321
    %v358 = vpack.c.b16 %v325, %v322
    %v359 = vpack.c.b16 %v329, %v326
    %v360 = vpack.c.b16 %v330, %v327
    %v361 = vpack.c.b16 %v331, %v328
    %v362 = vpack.c.b16 %v335, %v332
    %v363 = vpack.c.b16 %v336, %v333
    %v364 = vpack.c.b16 %v337, %v334
    %v365 = vpack.c.b16 %v341, %v338
    %v366 = vpack.c.b16 %v342, %v339
    %v367 = vpack.c.b16 %v343, %v340
    %392 = vmatprep.subr.bf16.mxu0 %v345
    %393 = vmatpush1.bf16.msra.mxu0 %v344
    %394 = vmatprep.subr.bf16.mxu0 %v348
    %395 = vmatpush1.bf16.msra.mxu0 %v347
    %396 = vmatprep.subr.bf16.mxu0 %v351
    %397 = vmatpush1.bf16.msra.mxu0 %v350
    %398 = vmatprep.subr.bf16.mxu0 %v354
    %399 = vmatpush1.bf16.msra.mxu0 %v353
    %400 = vmatprep.subr.bf16.mxu0 %v357
    %401 = vmatpush1.bf16.msra.mxu0 %v356
    %402 = vmatprep.subr.bf16.mxu0 %v360
    %403 = vmatpush1.bf16.msra.mxu0 %v359
    %404 = vmatprep.subr.bf16.mxu0 %v363
    %405 = vmatpush1.bf16.msra.mxu0 %v362
    %406 = vmatprep.subr.bf16.mxu0 %v366
    %407 = vmatpush1.bf16.msra.mxu0 %v365
    %408 = vmatprep.subr.bf16.mxu0 0
    %409 = vmatpush1.bf16.msra.mxu0 0
    %410 = vmatprep.subr.bf16.mxu0 0
    %411 = vmatpush1.bf16.msra.mxu0 0
    %412 = vmatprep.subr.bf16.mxu0 0
    %413 = vmatpush1.bf16.msra.mxu0 0
    %414 = vmatprep.subr.bf16.mxu0 0
    %415 = vmatpush1.bf16.msra.mxu0 0
    %416 = vmatprep.subr.bf16.mxu0 0
    %417 = vmatpush1.bf16.msra.mxu0 0
    %418 = vmatprep.subr.bf16.mxu0 0
    %419 = vmatpush1.bf16.msra.mxu0 0
    %420 = vmatprep.subr.bf16.mxu0 0
    %421 = vmatpush1.bf16.msra.mxu0 0
    %422 = vmatprep.subr.bf16.mxu0 0
    %423 = vmatpush1.bf16.msra.mxu0 0
    %424 = vmatprep.mubr.bf16.mxu0 0
    %425 = vmatmul.mubr.bf16.gmra.mrb[0].mxu0 %v214
    %v426 = vpop.f32.mrb[0].mxu0
    %v427 = vadd.f32 %v252, %v426
    %v428 = vpop.f32.mrb[0].mxu0
    %v429 = vadd.f32 %v256, %v428
    %v430 = vpop.f32.mrb[0].mxu0
    %v431 = vpop.f32.mrb[0].mxu0
    %432 = vdwg.mxu0
    %433 = vmatprep.subr.bf16.mxu0 0
    %434 = vmatpush1.bf16.msra.mxu0 %v346
    %435 = vmatprep.subr.bf16.mxu0 0
    %436 = vmatpush1.bf16.msra.mxu0 %v349
    %437 = vmatprep.subr.bf16.mxu0 0
    %438 = vmatpush1.bf16.msra.mxu0 %v352
    %439 = vmatprep.subr.bf16.mxu0 0
    %440 = vmatpush1.bf16.msra.mxu0 %v355
    %441 = vmatprep.subr.bf16.mxu0 0
    %442 = vmatpush1.bf16.msra.mxu0 %v358
    %443 = vmatprep.subr.bf16.mxu0 0
    %444 = vmatpush1.bf16.msra.mxu0 %v361
    %445 = vmatprep.subr.bf16.mxu0 0
    %446 = vmatpush1.bf16.msra.mxu0 %v364
    %447 = vmatprep.subr.bf16.mxu0 0
    %448 = vmatpush1.bf16.msra.mxu0 %v367
    %449 = vmatprep.subr.bf16.mxu0 0
    %450 = vmatpush1.bf16.msra.mxu0 0
    %451 = vmatprep.subr.bf16.mxu0 0
    %452 = vmatpush1.bf16.msra.mxu0 0
    %453 = vmatprep.subr.bf16.mxu0 0
    %454 = vmatpush1.bf16.msra.mxu0 0
    %455 = vmatprep.subr.bf16.mxu0 0
    %456 = vmatpush1.bf16.msra.mxu0 0
    %457 = vmatprep.subr.bf16.mxu0 0
    %458 = vmatpush1.bf16.msra.mxu0 0
    %459 = vmatprep.subr.bf16.mxu0 0
    %460 = vmatpush1.bf16.msra.mxu0 0
    %461 = vmatprep.subr.bf16.mxu0 0
    %462 = vmatpush1.bf16.msra.mxu0 0
    %463 = vmatprep.subr.bf16.mxu0 0
    %464 = vmatpush1.bf16.msra.mxu0 0
    %465 = vmatprep.mubr.bf16.mxu0 0
    %466 = vmatmul.mubr.bf16.gmra.mrb[0].mxu0 %v214
    %v467 = vpop.f32.mrb[0].mxu0
    %v468 = vadd.f32 %v260, %v467
    %v469 = vpop.f32.mrb[0].mxu0
    %v470 = vpop.f32.mrb[0].mxu0
    %v471 = vpop.f32.mrb[0].mxu0
    %472 = vdwg.mxu0
    %v473 = vld [vmem:[#allocation11] sm:$0xff]
    %v474 = vld [vmem:[#allocation11 + $0x8] sm:$0xf]
    %v475 = vld [vmem:[#allocation11 + $0xc] sm:$0xff]
    %v476 = vld [vmem:[#allocation11 + $0x14] sm:$0xf]
    %v477 = vld [vmem:[#allocation11 + $0x18] sm:$0xff]
    %v478 = vld [vmem:[#allocation11 + $0x20] sm:$0xf]
    %v479 = vld [vmem:[#allocation11 + $0x24] sm:$0xff]
    %v480 = vld [vmem:[#allocation11 + $0x2c] sm:$0xf]
    %v481 = vld [vmem:[#allocation11 + $0x30] sm:$0xff]
    %v482 = vld [vmem:[#allocation11 + $0x38] sm:$0xf]
    %v483 = vld [vmem:[#allocation11 + $0x3c] sm:$0xff]
    %v484 = vld [vmem:[#allocation11 + $0x44] sm:$0xf]
    %v485 = vld [vmem:[#allocation11 + $0x48] sm:$0xff]
    %v486 = vld [vmem:[#allocation11 + $0x50] sm:$0xf]
    %v487 = vld [vmem:[#allocation11 + $0x54] sm:$0xff]
    %v488 = vld [vmem:[#allocation11 + $0x5c] sm:$0xf]
    %v489 = vld [vmem:[#allocation11 + $0x60] sm:$0xff]
    %v490 = vld [vmem:[#allocation11 + $0x68] sm:$0xf]
    %v491 = vld [vmem:[#allocation11 + $0x6c] sm:$0xff]
    %v492 = vld [vmem:[#allocation11 + $0x74] sm:$0xf]
    %v493 = vld [vmem:[#allocation11 + $0x78] sm:$0xff]
    %v494 = vld [vmem:[#allocation11 + $0x80] sm:$0xf]
    %v495 = vld [vmem:[#allocation11 + $0x84] sm:$0xff]
    %v496 = vld [vmem:[#allocation11 + $0x8c] sm:$0xf]
    %v497 = vld [vmem:[#allocation11 + $0x90] sm:$0xff]
    %v498 = vld [vmem:[#allocation11 + $0x98] sm:$0xf]
    %v499 = vld [vmem:[#allocation11 + $0x9c] sm:$0xff]
    %v500 = vld [vmem:[#allocation11 + $0xa4] sm:$0xf]
    %v501 = vld [vmem:[#allocation11 + $0xa8] sm:$0xff]
    %v502 = vld [vmem:[#allocation11 + $0xb0] sm:$0xf]
    %v503 = vld [vmem:[#allocation11 + $0xb4] sm:$0xff]
    %v504 = vld [vmem:[#allocation11 + $0xbc] sm:$0xf]
    %v505 = vld [vmem:[%s8] sm:$0x7]
    %v507 = vlaneseq
    %v508 = vshrl.u32 %v507, 7
    %v509 = vsub.s32 0, %v508
    %v510 = vrot.slane %v505, %v509
    %v511 = vlaneseq
    %v512 = vshrl.u32 %v511, 7
    %v513 = vsub.s32 1, %v512
    %v514 = vrot.slane %v505, %v513
    %v515 = vlaneseq
    %v516 = vshrl.u32 %v515, 7
    %v517 = vsub.s32 2, %v516
    %v518 = vrot.slane %v505, %v517
    %v554 = vunpack.c.l.b16 %v473
    %v555 = vunpack.c.h.b16 %v473
    %v556 = vunpack.c.l.b16 %v474
    %v557 = vunpack.c.l.b16 %v475
    %v558 = vunpack.c.h.b16 %v475
    %v559 = vunpack.c.l.b16 %v476
    %v560 = vunpack.c.l.b16 %v477
    %v561 = vunpack.c.h.b16 %v477
    %v562 = vunpack.c.l.b16 %v478
    %v563 = vunpack.c.l.b16 %v479
    %v564 = vunpack.c.h.b16 %v479
    %v565 = vunpack.c.l.b16 %v480
    %v566 = vunpack.c.l.b16 %v481
    %v567 = vunpack.c.h.b16 %v481
    %v568 = vunpack.c.l.b16 %v482
    %v569 = vunpack.c.l.b16 %v483
    %v570 = vunpack.c.h.b16 %v483
    %v571 = vunpack.c.l.b16 %v484
    %v572 = vunpack.c.l.b16 %v485
    %v573 = vunpack.c.h.b16 %v485
    %v574 = vunpack.c.l.b16 %v486
    %v575 = vunpack.c.l.b16 %v487
    %v576 = vunpack.c.h.b16 %v487
    %v577 = vunpack.c.l.b16 %v488
    %v578 = vunpack.c.l.b16 %v489
    %v579 = vunpack.c.h.b16 %v489
    %v580 = vunpack.c.l.b16 %v490
    %v581 = vunpack.c.l.b16 %v491
    %v582 = vunpack.c.h.b16 %v491
    %v583 = vunpack.c.l.b16 %v492
    %v584 = vunpack.c.l.b16 %v493
    %v585 = vunpack.c.h.b16 %v493
    %v586 = vunpack.c.l.b16 %v494
    %v587 = vunpack.c.l.b16 %v495
    %v588 = vunpack.c.h.b16 %v495
    %v589 = vunpack.c.l.b16 %v496
    %v590 = vunpack.c.l.b16 %v497
    %v591 = vunpack.c.h.b16 %v497
    %v592 = vunpack.c.l.b16 %v498
    %v593 = vunpack.c.l.b16 %v499
    %v594 = vunpack.c.h.b16 %v499
    %v595 = vunpack.c.l.b16 %v500
    %v596 = vunpack.c.l.b16 %v501
    %v597 = vunpack.c.h.b16 %v501
    %v598 = vunpack.c.l.b16 %v502
    %v599 = vunpack.c.l.b16 %v503
    %v600 = vunpack.c.h.b16 %v503
    %v601 = vunpack.c.l.b16 %v504
    %v602 = vpack.c.b16 %v557, %v554
    %v603 = vpack.c.b16 %v558, %v555
    %v604 = vpack.c.b16 %v559, %v556
    %v605 = vpack.c.b16 %v563, %v560
    %v606 = vpack.c.b16 %v564, %v561
    %v607 = vpack.c.b16 %v565, %v562
    %v608 = vpack.c.b16 %v569, %v566
    %v609 = vpack.c.b16 %v570, %v567
    %v610 = vpack.c.b16 %v571, %v568
    %v611 = vpack.c.b16 %v575, %v572
    %v612 = vpack.c.b16 %v576, %v573
    %v613 = vpack.c.b16 %v577, %v574
    %v614 = vpack.c.b16 %v581, %v578
    %v615 = vpack.c.b16 %v582, %v579
    %v616 = vpack.c.b16 %v583, %v580
    %v617 = vpack.c.b16 %v587, %v584
    %v618 = vpack.c.b16 %v588, %v585
    %v619 = vpack.c.b16 %v589, %v586
    %v620 = vpack.c.b16 %v593, %v590
    %v621 = vpack.c.b16 %v594, %v591
    %v622 = vpack.c.b16 %v595, %v592
    %v623 = vpack.c.b16 %v599, %v596
    %v624 = vpack.c.b16 %v600, %v597
    %v625 = vpack.c.b16 %v601, %v598
    %650 = vmatprep.subr.bf16.mxu0 %v603
    %651 = vmatpush1.bf16.msra.mxu0 %v602
    %652 = vmatprep.subr.bf16.mxu0 %v606
    %653 = vmatpush1.bf16.msra.mxu0 %v605
    %654 = vmatprep.subr.bf16.mxu0 %v609
    %655 = vmatpush1.bf16.msra.mxu0 %v608
    %656 = vmatprep.subr.bf16.mxu0 %v612
    %657 = vmatpush1.bf16.msra.mxu0 %v611
    %658 = vmatprep.subr.bf16.mxu0 %v615
    %659 = vmatpush1.bf16.msra.mxu0 %v614
    %660 = vmatprep.subr.bf16.mxu0 %v618
    %661 = vmatpush1.bf16.msra.mxu0 %v617
    %662 = vmatprep.subr.bf16.mxu0 %v621
    %663 = vmatpush1.bf16.msra.mxu0 %v620
    %664 = vmatprep.subr.bf16.mxu0 %v624
    %665 = vmatpush1.bf16.msra.mxu0 %v623
    %666 = vmatprep.subr.bf16.mxu0 0
    %667 = vmatpush1.bf16.msra.mxu0 0
    %668 = vmatprep.subr.bf16.mxu0 0
    %669 = vmatpush1.bf16.msra.mxu0 0
    %670 = vmatprep.subr.bf16.mxu0 0
    %671 = vmatpush1.bf16.msra.mxu0 0
    %672 = vmatprep.subr.bf16.mxu0 0
    %673 = vmatpush1.bf16.msra.mxu0 0
    %674 = vmatprep.subr.bf16.mxu0 0
    %675 = vmatpush1.bf16.msra.mxu0 0
    %676 = vmatprep.subr.bf16.mxu0 0
    %677 = vmatpush1.bf16.msra.mxu0 0
    %678 = vmatprep.subr.bf16.mxu0 0
    %679 = vmatpush1.bf16.msra.mxu0 0
    %680 = vmatprep.subr.bf16.mxu0 0
    %681 = vmatpush1.bf16.msra.mxu0 0
    %682 = vmatprep.mubr.bf16.mxu0 0
    %683 = vmatmul.mubr.bf16.gmra.mrb[0].mxu0 %v151
    %v684 = vpop.f32.mrb[0].mxu0
    %v685 = vadd.f32 %v510, %v684
    %v686 = vpop.f32.mrb[0].mxu0
    %v687 = vadd.f32 %v514, %v686
    %v688 = vpop.f32.mrb[0].mxu0
    %v689 = vpop.f32.mrb[0].mxu0
    %690 = vdwg.mxu0
    %691 = vmatprep.subr.bf16.mxu0 0
    %692 = vmatpush1.bf16.msra.mxu0 %v604
    %693 = vmatprep.subr.bf16.mxu0 0
    %694 = vmatpush1.bf16.msra.mxu0 %v607
    %695 = vmatprep.subr.bf16.mxu0 0
    %696 = vmatpush1.bf16.msra.mxu0 %v610
    %697 = vmatprep.subr.bf16.mxu0 0
    %698 = vmatpush1.bf16.msra.mxu0 %v613
    %699 = vmatprep.subr.bf16.mxu0 0
    %700 = vmatpush1.bf16.msra.mxu0 %v616
    %701 = vmatprep.subr.bf16.mxu0 0
    %702 = vmatpush1.bf16.msra.mxu0 %v619
    %703 = vmatprep.subr.bf16.mxu0 0
    %704 = vmatpush1.bf16.msra.mxu0 %v622
    %705 = vmatprep.subr.bf16.mxu0 0
    %706 = vmatpush1.bf16.msra.mxu0 %v625
    %707 = vmatprep.subr.bf16.mxu0 0
    %708 = vmatpush1.bf16.msra.mxu0 0
    %709 = vmatprep.subr.bf16.mxu0 0
    %710 = vmatpush1.bf16.msra.mxu0 0
    %711 = vmatprep.subr.bf16.mxu0 0
    %712 = vmatpush1.bf16.msra.mxu0 0
    %713 = vmatprep.subr.bf16.mxu0 0
    %714 = vmatpush1.bf16.msra.mxu0 0
    %715 = vmatprep.subr.bf16.mxu0 0
    %716 = vmatpush1.bf16.msra.mxu0 0
    %717 = vmatprep.subr.bf16.mxu0 0
    %718 = vmatpush1.bf16.msra.mxu0 0
    %719 = vmatprep.subr.bf16.mxu0 0
    %720 = vmatpush1.bf16.msra.mxu0 0
    %721 = vmatprep.subr.bf16.mxu0 0
    %722 = vmatpush1.bf16.msra.mxu0 0
    %723 = vmatprep.mubr.bf16.mxu0 0
    %724 = vmatmul.mubr.bf16.gmra.mrb[0].mxu0 %v151
    %v725 = vpop.f32.mrb[0].mxu0
    %v726 = vadd.f32 %v518, %v725
    %v727 = vpop.f32.mrb[0].mxu0
    %v728 = vpop.f32.mrb[0].mxu0
    %v729 = vpop.f32.mrb[0].mxu0
    %730 = vdwg.mxu0
    %v731 = vadd.f32 %v427, %v685
    %v732 = vxor.u32 %v731, 2147483648
    %v733 = vmul.f32 %v732, 1.442695
    %v734 = vpow.pop %v733
    %v735 = vadd.f32 %v734, 1.0
    %v736 = vrcp.pop %v735
    %v737 = vmul.f32 1.0, %v736
    %v738 = vadd.f32 %v429, %v687
    %v739 = vxor.u32 %v738, 2147483648
    %v740 = vmul.f32 %v739, 1.442695
    %v741 = vpow.pop %v740
    %v742 = vadd.f32 %v741, 1.0
    %v743 = vrcp.pop %v742
    %v744 = vmul.f32 1.0, %v743
    %v745 = vmul.f32 %v737, %v726
    %v746 = vadd.f32 %v468, %v745
    %v747 = vtanh.pop %v746
    %v748 = vsub.f32 %v153, %v747
    %v749 = vmul.f32 %v744, %v748
    %v750 = vadd.f32 %v747, %v749
    %v751 = vpack.c.bf16 %v750, %v750
    %v752 = vld [vmem:[#allocation13] sm:$0xff]
    %v753 = vld [vmem:[#allocation13 + $0x8] sm:$0xff]
    %v754 = vld [vmem:[#allocation13 + $0x10] sm:$0xff]
    %v755 = vld [vmem:[#allocation13 + $0x18] sm:$0xff]
    %v756 = vld [vmem:[#allocation13 + $0x20] sm:$0xff]
    %v757 = vld [vmem:[#allocation13 + $0x28] sm:$0xff]
    %v758 = vld [vmem:[#allocation13 + $0x30] sm:$0xff]
    %v759 = vld [vmem:[#allocation13 + $0x38] sm:$0xff]
    %v760 = vld [vmem:[#allocation13 + $0x40] sm:$0xff]
    %v761 = vld [vmem:[#allocation13 + $0x48] sm:$0xff]
    %v762 = vld [vmem:[#allocation13 + $0x50] sm:$0xff]
    %v763 = vld [vmem:[#allocation13 + $0x58] sm:$0xff]
    %v764 = vld [vmem:[#allocation13 + $0x60] sm:$0xff]
    %v765 = vld [vmem:[#allocation13 + $0x68] sm:$0xff]
    %v766 = vld [vmem:[#allocation13 + $0x70] sm:$0xff]
    %v767 = vld [vmem:[#allocation13 + $0x78] sm:$0xff]
    %v768 = vld [vmem:[%s10] sm:$0x3]
    %v770 = vlaneseq
    %v771 = vshrl.u32 %v770, 7
    %v772 = vsub.s32 0, %v771
    %v773 = vrot.slane %v768, %v772
    %v774 = vlaneseq
    %v775 = vshrl.u32 %v774, 7
    %v776 = vsub.s32 1, %v775
    %v777 = vrot.slane %v768, %v776
    %v796 = vunpack.c.l.b16 %v752
    %v797 = vunpack.c.h.b16 %v752
    %v798 = vunpack.c.l.b16 %v753
    %v799 = vunpack.c.h.b16 %v753
    %v800 = vunpack.c.l.b16 %v754
    %v801 = vunpack.c.h.b16 %v754
    %v802 = vunpack.c.l.b16 %v755
    %v803 = vunpack.c.h.b16 %v755
    %v804 = vunpack.c.l.b16 %v756
    %v805 = vunpack.c.h.b16 %v756
    %v806 = vunpack.c.l.b16 %v757
    %v807 = vunpack.c.h.b16 %v757
    %v808 = vunpack.c.l.b16 %v758
    %v809 = vunpack.c.h.b16 %v758
    %v810 = vunpack.c.l.b16 %v759
    %v811 = vunpack.c.h.b16 %v759
    %v812 = vunpack.c.l.b16 %v760
    %v813 = vunpack.c.h.b16 %v760
    %v814 = vunpack.c.l.b16 %v761
    %v815 = vunpack.c.h.b16 %v761
    %v816 = vunpack.c.l.b16 %v762
    %v817 = vunpack.c.h.b16 %v762
    %v818 = vunpack.c.l.b16 %v763
    %v819 = vunpack.c.h.b16 %v763
    %v820 = vunpack.c.l.b16 %v764
    %v821 = vunpack.c.h.b16 %v764
    %v822 = vunpack.c.l.b16 %v765
    %v823 = vunpack.c.h.b16 %v765
    %v824 = vunpack.c.l.b16 %v766
    %v825 = vunpack.c.h.b16 %v766
    %v826 = vunpack.c.l.b16 %v767
    %v827 = vunpack.c.h.b16 %v767
    %v828 = vpack.c.b16 %v798, %v796
    %v829 = vpack.c.b16 %v799, %v797
    %v830 = vpack.c.b16 %v802, %v800
    %v831 = vpack.c.b16 %v803, %v801
    %v832 = vpack.c.b16 %v806, %v804
    %v833 = vpack.c.b16 %v807, %v805
    %v834 = vpack.c.b16 %v810, %v808
    %v835 = vpack.c.b16 %v811, %v809
    %v836 = vpack.c.b16 %v814, %v812
    %v837 = vpack.c.b16 %v815, %v813
    %v838 = vpack.c.b16 %v818, %v816
    %v839 = vpack.c.b16 %v819, %v817
    %v840 = vpack.c.b16 %v822, %v820
    %v841 = vpack.c.b16 %v823, %v821
    %v842 = vpack.c.b16 %v826, %v824
    %v843 = vpack.c.b16 %v827, %v825
    %860 = vmatprep.subr.bf16.mxu0 %v829
    %861 = vmatpush1.bf16.msra.mxu0 %v828
    %862 = vmatprep.subr.bf16.mxu0 %v831
    %863 = vmatpush1.bf16.msra.mxu0 %v830
    %864 = vmatprep.subr.bf16.mxu0 %v833
    %865 = vmatpush1.bf16.msra.mxu0 %v832
    %866 = vmatprep.subr.bf16.mxu0 %v835
    %867 = vmatpush1.bf16.msra.mxu0 %v834
    %868 = vmatprep.subr.bf16.mxu0 %v837
    %869 = vmatpush1.bf16.msra.mxu0 %v836
    %870 = vmatprep.subr.bf16.mxu0 %v839
    %871 = vmatpush1.bf16.msra.mxu0 %v838
    %872 = vmatprep.subr.bf16.mxu0 %v841
    %873 = vmatpush1.bf16.msra.mxu0 %v840
    %874 = vmatprep.subr.bf16.mxu0 %v843
    %875 = vmatpush1.bf16.msra.mxu0 %v842
    %876 = vmatprep.subr.bf16.mxu0 0
    %877 = vmatpush1.bf16.msra.mxu0 0
    %878 = vmatprep.subr.bf16.mxu0 0
    %879 = vmatpush1.bf16.msra.mxu0 0
    %880 = vmatprep.subr.bf16.mxu0 0
    %881 = vmatpush1.bf16.msra.mxu0 0
    %882 = vmatprep.subr.bf16.mxu0 0
    %883 = vmatpush1.bf16.msra.mxu0 0
    %884 = vmatprep.subr.bf16.mxu0 0
    %885 = vmatpush1.bf16.msra.mxu0 0
    %886 = vmatprep.subr.bf16.mxu0 0
    %887 = vmatpush1.bf16.msra.mxu0 0
    %888 = vmatprep.subr.bf16.mxu0 0
    %889 = vmatpush1.bf16.msra.mxu0 0
    %890 = vmatprep.subr.bf16.mxu0 0
    %891 = vmatpush1.bf16.msra.mxu0 0
    %892 = vmatprep.mubr.bf16.mxu0 0
    %893 = vmatmul.mubr.bf16.gmra.mrb[0].mxu0 %v751
    %v894 = vpop.f32.mrb[0].mxu0
    %v895 = vadd.f32 %v773, %v894
    %v896 = vpop.f32.mrb[0].mxu0
    %v897 = vadd.f32 %v777, %v896
    %v898 = vpop.f32.mrb[0].mxu0
    %v899 = vpop.f32.mrb[0].mxu0
    %900 = vdwg.mxu0
    %v901 = vld [vmem:[%s11] sm:$0xf]
    %vm902 = vcmask 64512
    %v904 = vsel %vm902, %v152, 0
    %vm906 = vcmask 1043456
    %v908 = vsel %vm906, %v901, 0
    %910 = vmatprep.subr.bf16.mxu0 0
    %911 = vmatpush1.bf16.msra.mxu0 %v908
    %912 = vmatprep.subr.bf16.mxu0 0
    %913 = vmatpush1.bf16.msra.mxu0 0
    %914 = vmatprep.subr.bf16.mxu0 0
    %915 = vmatpush1.bf16.msra.mxu0 0
    %916 = vmatprep.subr.bf16.mxu0 0
    %917 = vmatpush1.bf16.msra.mxu0 0
    %918 = vmatprep.subr.bf16.mxu0 0
    %919 = vmatpush1.bf16.msra.mxu0 0
    %920 = vmatprep.subr.bf16.mxu0 0
    %921 = vmatpush1.bf16.msra.mxu0 0
    %922 = vmatprep.subr.bf16.mxu0 0
    %923 = vmatpush1.bf16.msra.mxu0 0
    %924 = vmatprep.subr.bf16.mxu0 0
    %925 = vmatpush1.bf16.msra.mxu0 0
    %926 = vmatprep.subr.bf16.mxu0 0
    %927 = vmatpush1.bf16.msra.mxu0 0
    %928 = vmatprep.subr.bf16.mxu0 0
    %929 = vmatpush1.bf16.msra.mxu0 0
    %930 = vmatprep.subr.bf16.mxu0 0
    %931 = vmatpush1.bf16.msra.mxu0 0
    %932 = vmatprep.subr.bf16.mxu0 0
    %933 = vmatpush1.bf16.msra.mxu0 0
    %934 = vmatprep.subr.bf16.mxu0 0
    %935 = vmatpush1.bf16.msra.mxu0 0
    %936 = vmatprep.subr.bf16.mxu0 0
    %937 = vmatpush1.bf16.msra.mxu0 0
    %938 = vmatprep.subr.bf16.mxu0 0
    %939 = vmatpush1.bf16.msra.mxu0 0
    %940 = vmatprep.subr.bf16.mxu0 0
    %941 = vmatpush1.bf16.msra.mxu0 0
    %942 = vmatprep.mubr.bf16.mxu0 0
    %943 = vmatmul.mubr.bf16.gmra.mrb[0].mxu0 %v904
    %v944 = vpop.f32.mrb[0].mxu0
    %v945 = vadd.f32 0.0, %v944
    %v946 = vpop.f32.mrb[0].mxu0
    %v947 = vpop.f32.mrb[0].mxu0
    %v948 = vpop.f32.mrb[0].mxu0
    %949 = vdwg.mxu0
    %v950 = vadd.f32 %v895, %v945
    %v951 = vmax.f32 %v950, 0.0
    %v952 = vpack.c.bf16 %v951, %v951
    %v953 = vld [vmem:[#allocation14] sm:$0xf]
    %v954 = vld [vmem:[#allocation14 + $0x4] sm:$0xf]
    %v955 = vld [vmem:[#allocation14 + $0x8] sm:$0xf]
    %v956 = vld [vmem:[#allocation14 + $0xc] sm:$0xf]
    %v957 = vld [vmem:[#allocation14 + $0x10] sm:$0xf]
    %v958 = vld [vmem:[#allocation14 + $0x14] sm:$0xf]
    %v959 = vld [vmem:[#allocation14 + $0x18] sm:$0xf]
    %v960 = vld [vmem:[#allocation14 + $0x1c] sm:$0xf]
    %v961 = vld [vmem:[#allocation14 + $0x20] sm:$0xf]
    %v962 = vld [vmem:[#allocation14 + $0x24] sm:$0xf]
    %v963 = vld [vmem:[#allocation14 + $0x28] sm:$0xf]
    %v964 = vld [vmem:[#allocation14 + $0x2c] sm:$0xf]
    %v965 = vld [vmem:[#allocation14 + $0x30] sm:$0xf]
    %v966 = vld [vmem:[#allocation14 + $0x34] sm:$0xf]
    %v967 = vld [vmem:[#allocation14 + $0x38] sm:$0xf]
    %v968 = vld [vmem:[#allocation14 + $0x3c] sm:$0xf]
    %v985 = vunpack.c.l.b16 %v953
    %v986 = vunpack.c.l.b16 %v954
    %v987 = vunpack.c.l.b16 %v955
    %v988 = vunpack.c.l.b16 %v956
    %v989 = vunpack.c.l.b16 %v957
    %v990 = vunpack.c.l.b16 %v958
    %v991 = vunpack.c.l.b16 %v959
    %v992 = vunpack.c.l.b16 %v960
    %v993 = vunpack.c.l.b16 %v961
    %v994 = vunpack.c.l.b16 %v962
    %v995 = vunpack.c.l.b16 %v963
    %v996 = vunpack.c.l.b16 %v964
    %v997 = vunpack.c.l.b16 %v965
    %v998 = vunpack.c.l.b16 %v966
    %v999 = vunpack.c.l.b16 %v967
    %v1000 = vunpack.c.l.b16 %v968
    %v1001 = vpack.c.b16 %v986, %v985
    %v1002 = vpack.c.b16 %v988, %v987
    %v1003 = vpack.c.b16 %v990, %v989
    %v1004 = vpack.c.b16 %v992, %v991
    %v1005 = vpack.c.b16 %v994, %v993
    %v1006 = vpack.c.b16 %v996, %v995
    %v1007 = vpack.c.b16 %v998, %v997
    %v1008 = vpack.c.b16 %v1000, %v999
    %1017 = vmatprep.subr.bf16.mxu0 0
    %1018 = vmatpush1.bf16.msra.mxu0 %v1001
    %1019 = vmatprep.subr.bf16.mxu0 0
    %1020 = vmatpush1.bf16.msra.mxu0 %v1002
    %1021 = vmatprep.subr.bf16.mxu0 0
    %1022 = vmatpush1.bf16.msra.mxu0 %v1003
    %1023 = vmatprep.subr.bf16.mxu0 0
    %1024 = vmatpush1.bf16.msra.mxu0 %v1004
    %1025 = vmatprep.subr.bf16.mxu0 0
    %1026 = vmatpush1.bf16.msra.mxu0 %v1005
    %1027 = vmatprep.subr.bf16.mxu0 0
    %1028 = vmatpush1.bf16.msra.mxu0 %v1006
    %1029 = vmatprep.subr.bf16.mxu0 0
    %1030 = vmatpush1.bf16.msra.mxu0 %v1007
    %1031 = vmatprep.subr.bf16.mxu0 0
    %1032 = vmatpush1.bf16.msra.mxu0 %v1008
    %1033 = vmatprep.subr.bf16.mxu0 0
    %1034 = vmatpush1.bf16.msra.mxu0 0
    %1035 = vmatprep.subr.bf16.mxu0 0
    %1036 = vmatpush1.bf16.msra.mxu0 0
    %1037 = vmatprep.subr.bf16.mxu0 0
    %1038 = vmatpush1.bf16.msra.mxu0 0
    %1039 = vmatprep.subr.bf16.mxu0 0
    %1040 = vmatpush1.bf16.msra.mxu0 0
    %1041 = vmatprep.subr.bf16.mxu0 0
    %1042 = vmatpush1.bf16.msra.mxu0 0
    %1043 = vmatprep.subr.bf16.mxu0 0
    %1044 = vmatpush1.bf16.msra.mxu0 0
    %1045 = vmatprep.subr.bf16.mxu0 0
    %1046 = vmatpush1.bf16.msra.mxu0 0
    %1047 = vmatprep.subr.bf16.mxu0 0
    %1048 = vmatpush1.bf16.msra.mxu0 0
    %1049 = vmatprep.mubr.bf16.mxu0 0
    %1050 = vmatmul.mubr.bf16.gmra.mrb[0].mxu0 %v952
    %v1051 = vpop.f32.mrb[0].mxu0
    %v1052 = vadd.f32 0.0, %v1051
    %v1053 = vpop.f32.mrb[0].mxu0
    %v1054 = vpop.f32.mrb[0].mxu0
    %v1055 = vpop.f32.mrb[0].mxu0
    %1056 = vdwg.mxu0
    %v1057 = vadd.f32 %v897, %v1052
    %1058 = vst [vmem:[#allocation16] sm:$0xff] %v1057
    %1059 = vst [vmem:[#allocation17] sm:$0xf] %v751
    // Predicated region
    $region86: #{tpu_custom_call.1} parent=1 // pred_check
      _
    $region87: #{tpu_custom_call.1} parent=1 // pred_check_branch
      %1061 = sbr.rel (0) target = $region89
    $region88: #{tpu_custom_call.1} parent=1 // pred_region
      %s1063 = ssub.s32 128, 128
      %1064 = vsyncadd [#allocation4], %s1063
      %s1066 = sshll.u32 [#allocation16], 4
      %s1067 = int_to_ptr.vmem [resolvable:$true] %s1066
      %1069 = dma.vmem_to_hbm [thread:$0]  %s1067, 128, %s13, [#allocation4]
    $region89: #{tpu_custom_call.1} parent=1 // pred_fallthru
      _
    // Predicated region
    $region90: #{tpu_custom_call.1} parent=1 // pred_check
      _
    $region91: #{tpu_custom_call.1} parent=1 // pred_check_branch
      %1071 = sbr.rel (0) target = $region93
    $region92: #{tpu_custom_call.1} parent=1 // pred_region
      %s1073 = ssub.s32 64, 64
      %1074 = vsyncadd [#allocation18], %s1073
      %s1076 = sshll.u32 [#allocation17], 4
      %s1077 = int_to_ptr.vmem [resolvable:$true] %s1076
      %1079 = dma.vmem_to_hbm [thread:$0]  %s1077, 64, %s14, [#allocation18]
    $region93: #{tpu_custom_call.1} parent=1 // pred_fallthru
      _
    // Predicated region
    $region94: #{tpu_custom_call.1} parent=1 // pred_check
      _
    $region95: #{tpu_custom_call.1} parent=1 // pred_check_branch
      %1081 = sbr.rel (0) target = $region97
    $region96: #{tpu_custom_call.1} parent=1 // pred_region
      %1082 = dma.done [#allocation4], 128
    $region97: #{tpu_custom_call.1} parent=1 // pred_fallthru
      _
    // Predicated region
    $region98: #{tpu_custom_call.1} parent=1 // pred_check
      _
    $region99: #{tpu_custom_call.1} parent=1 // pred_check_branch
      %1084 = sbr.rel (0) target = $region101
    $region100: #{tpu_custom_call.1} parent=1 // pred_region
      %1085 = dma.done [#allocation18], 64
    $region101: #{tpu_custom_call.1} parent=1 // pred_fallthru
      _
    %1086 = vsyncpa [#allocation3], 1
    %1087 = vsyncpa [#allocation6], 1
    %1088 = vsyncpa [#allocation9], 1
    %1089 = vsyncpa [#allocation12], 1
    %1090 = vsyncpa [#allocation15], 1
    %1091 = vsyncpa [#allocation4], 1
    %1092 = vsyncpa [#allocation18], 1

</llo_original>
